<compile_context>
chip_gen: v7x
topology: tpu7x:2x2x1
jax: 0.10.0
libtpu: 0.0.40
codegen_flags: <defaults>
</compile_context>

<pallas_src>
import functools
import math

import jax
import jax.numpy as jnp
from jax.experimental import pallas as pl
from jax.experimental.pallas import tpu as pltpu


# ----------------------------- config ---------------------------------------
VOCAB_SIZE = 50
D_MODEL = 32
D_FF = 64
NUM_LAYERS = 2
NUM_HEADS = 4
D_HEAD = D_MODEL // NUM_HEADS
DROPOUT = 0.1  # identity at inference

BATCH = 2
SEQ = 8

VEC_ROWS = 8      # packed bias/LN slab rows
VEC_WIDTH = 128   # packed bias/LN slab lanes (>= max(3*D_MODEL, D_FF))


# ----------------------------- glue (plain JAX) -----------------------------
def pos_encoding(t_len, d_model):
    # Mirrors PosEncoding() from the PyTorch reference (meshgrid 'ij').
    i = jnp.arange(d_model)
    pos = jnp.arange(t_len)
    POS, I = jnp.meshgrid(pos, i, indexing="ij")
    PE = (1 - I % 2) * jnp.sin(POS / 10.0 ** (4.0 * I / d_model)) + (
        I % 2
    ) * jnp.cos(POS / 10.0 ** (4.0 * (I - 1) / d_model))
    return PE.astype(jnp.float32)


# ----------------------------- Pallas kernel --------------------------------
def _encoder_block_kernel(
    lens_ref,   # (B, 1)   int32   per-batch valid key length
    x_ref,      # (B, S, D) f32    block input (embedding + pos-enc)
    wqkv_ref,   # (D, 3D)  f32     packed [Wq | Wk | Wv]
    wo_ref,     # (D, D)   f32
    w1_ref,     # (D, DFF) f32
    w2_ref,     # (DFF, D) f32
    vec_ref,    # (8, 128) f32     packed bias / LayerNorm vectors
    out_ref,    # (B, S, D) f32
    *,
    num_heads,
    d_head,
    d_model,
    d_ff,
    seq_len,
    batch,
):
    B, S, D = batch, seq_len, d_model
    x2 = x_ref[...].reshape(B * S, D)  # (B*S, D)

    # --- packed parameter vectors (one VMEM (8,128) slab) ---
    b_qkv = vec_ref[0:1, 0:3 * D]   # (1, 3D)
    b_o = vec_ref[1:2, 0:D]
    g1 = vec_ref[2:3, 0:D]
    be1 = vec_ref[3:4, 0:D]
    b1 = vec_ref[4:5, 0:d_ff]
    b2 = vec_ref[5:6, 0:D]
    g2 = vec_ref[6:7, 0:D]
    be2 = vec_ref[7:8, 0:D]

    # --- fused QKV projection: one lane-dense 96-wide MXU matmul ---
    qkv = jnp.dot(x2, wqkv_ref[...], preferred_element_type=jnp.float32) + b_qkv

    # --- additive key-padding mask: 0 for valid keys, -1e30 for padded keys ---
    # (finite value instead of -inf: exp underflows to exactly 0, no inf-inf NaN)
    lens = lens_ref[...]                                       # (B, 1) int32
    key_idx = jax.lax.broadcasted_iota(jnp.int32, (B, S), 1)   # (B, S)
    neg = jnp.where(key_idx < lens, 0.0, -1e30).astype(jnp.float32)
    neg_b = neg[:, None, :]                                    # (B, 1, S)

    # --- multi-head self-attention (static head unroll, batched over B) ---
    wo = wo_ref[...]
    inv_scale = jnp.float32(1.0 / math.sqrt(d_head))
    att = jnp.zeros((B * S, D), jnp.float32)
    for h in range(num_heads):
        q0 = h * d_head
        k0 = D + h * d_head
        v0 = 2 * D + h * d_head
        Qh = qkv[:, q0:q0 + d_head].reshape(B, S, d_head)
        Kh = qkv[:, k0:k0 + d_head].reshape(B, S, d_head)
        Vh = qkv[:, v0:v0 + d_head].reshape(B, S, d_head)
        s = (
            jnp.einsum("bqd,bkd->bqk", Qh, Kh, preferred_element_type=jnp.float32)
            * inv_scale
            + neg_b
        )
        m = jnp.max(s, axis=-1, keepdims=True)
        p = jnp.exp(s - m)
        attn = p * pl.reciprocal(jnp.sum(p, axis=-1, keepdims=True), approx=True)
        oh = jnp.einsum("bqk,bkd->bqd", attn, Vh, preferred_element_type=jnp.float32)
        # accumulate each head directly into the W_O projection (no concat)
        att = att + jnp.dot(
            oh.reshape(B * S, d_head),
            wo[q0:q0 + d_head, :],
            preferred_element_type=jnp.float32,
        )
    att = att + b_o

    # --- residual + LayerNorm 1 ---
    y = x2 + att
    mu = jnp.mean(y, axis=-1, keepdims=True)
    var = jnp.mean((y - mu) ** 2, axis=-1, keepdims=True)
    y = (y - mu) * jax.lax.rsqrt(var + 1e-5) * g1 + be1

    # --- feed-forward ---
    h1 = jnp.dot(y, w1_ref[...], preferred_element_type=jnp.float32) + b1
    h1 = jnp.maximum(h1, 0.0)
    ff = jnp.dot(h1, w2_ref[...], preferred_element_type=jnp.float32) + b2

    # --- residual + LayerNorm 2 ---
    z = y + ff
    mu2 = jnp.mean(z, axis=-1, keepdims=True)
    var2 = jnp.mean((z - mu2) ** 2, axis=-1, keepdims=True)
    z = (z - mu2) * jax.lax.rsqrt(var2 + 1e-5) * g2 + be2

    out_ref[...] = z.reshape(B, S, D)


def encoder_block_pallas(x, src_batch_lens, packed):
    """One TF_Encoder_Block. x: (B, S, D) f32; src_batch_lens: (B,) int."""
    B, S, D = x.shape
    lens2d = src_batch_lens.astype(jnp.int32).reshape(B, 1)

    kernel = functools.partial(
        _encoder_block_kernel,
        num_heads=NUM_HEADS,
        d_head=D_HEAD,
        d_model=D,
        d_ff=D_FF,
        seq_len=S,
        batch=B,
    )

    full = lambda shape: pl.BlockSpec(shape, lambda i: (0,) * len(shape))

    return pl.pallas_call(
        kernel,
        out_shape=jax.ShapeDtypeStruct((B, S, D), jnp.float32),
        grid=(1,),  # single grid step: whole (B, S, D) block processed at once
        in_specs=[
            full((B, 1)),
            full((B, S, D)),
            full(packed["w_qkv"].shape),
            full(packed["w_o"].shape),
            full(packed["w1"].shape),
            full(packed["w2"].shape),
            full(packed["vec"].shape),
        ],
        out_specs=full((B, S, D)),
        compiler_params=pltpu.CompilerParams(dimension_semantics=("arbitrary",)),
    )(lens2d, x, packed["w_qkv"], packed["w_o"], packed["w1"], packed["w2"], packed["vec"])


# ----------------------------- parameter packing ----------------------------
def pack_layer_params(lp):
    """Pack the 16 small per-layer tensors into 5 lane-dense arrays."""
    w_qkv = jnp.concatenate([lp["wq"], lp["wk"], lp["wv"]], axis=1)  # (D, 3D)
    vec = jnp.zeros((VEC_ROWS, VEC_WIDTH), jnp.float32)
    vec = vec.at[0, : 3 * D_MODEL].set(
        jnp.concatenate([lp["bq"][0], lp["bk"][0], lp["bv"][0]])
    )
    vec = vec.at[1, :D_MODEL].set(lp["bo"][0])
    vec = vec.at[2, :D_MODEL].set(lp["g1"][0])
    vec = vec.at[3, :D_MODEL].set(lp["be1"][0])
    vec = vec.at[4, :D_FF].set(lp["b1"][0])
    vec = vec.at[5, :D_MODEL].set(lp["b2"][0])
    vec = vec.at[6, :D_MODEL].set(lp["g2"][0])
    vec = vec.at[7, :D_MODEL].set(lp["be2"][0])
    return dict(w_qkv=w_qkv, w_o=lp["wo"], w1=lp["w1"], w2=lp["w2"], vec=vec)


# ----------------------------- parameter init -------------------------------
def init_params(key):
    def lin(key, fan_in, fan_out):
        k1, k2 = jax.random.split(key)
        w = jax.random.normal(k1, (fan_in, fan_out), jnp.float32) * 0.05
        b = jax.random.normal(k2, (1, fan_out), jnp.float32) * 0.05
        return w, b

    keys = jax.random.split(key, NUM_LAYERS + 1)
    embed = jax.random.normal(keys[0], (VOCAB_SIZE, D_MODEL), jnp.float32) * 0.1

    packed_layers = []
    for li in range(NUM_LAYERS):
        ks = jax.random.split(keys[li + 1], 6)
        wq, bq = lin(ks[0], D_MODEL, D_HEAD * NUM_HEADS)
        wk, bk = lin(ks[1], D_MODEL, D_HEAD * NUM_HEADS)
        wv, bv = lin(ks[2], D_MODEL, D_HEAD * NUM_HEADS)
        wo, bo = lin(ks[3], D_HEAD * NUM_HEADS, D_MODEL)
        w1, b1 = lin(ks[4], D_MODEL, D_FF)
        w2, b2 = lin(ks[5], D_FF, D_MODEL)
        raw = dict(
            wq=wq, bq=bq, wk=wk, bk=bk, wv=wv, bv=bv, wo=wo, bo=bo,
            g1=jnp.ones((1, D_MODEL), jnp.float32),
            be1=jnp.zeros((1, D_MODEL), jnp.float32),
            w1=w1, b1=b1, w2=w2, b2=b2,
            g2=jnp.ones((1, D_MODEL), jnp.float32),
            be2=jnp.zeros((1, D_MODEL), jnp.float32),
        )
        packed_layers.append(pack_layer_params(raw))
    return dict(embed=embed, packed_layers=packed_layers)


# ----------------------------- full forward ---------------------------------
@jax.jit
def tf_encoder_forward(params, tokens, src_batch_lens):
    # tokens: (B, S) int32 ; src_batch_lens: (B,) int32
    B, S = tokens.shape
    x = jnp.take(params["embed"], tokens, axis=0)  # (B, S, D) embedding lookup
    # dropout -> identity (inference)
    x = x + pos_encoding(S, D_MODEL)[None, :, :]
    # The PyTorch reference loop feeds the ORIGINAL x into every layer and keeps
    # only the last layer's output, so only the final block needs evaluating --
    # the result is identical, and dead kernel launches are avoided.
    return encoder_block_pallas(x, src_batch_lens, params["packed_layers"][-1])


# ----------------------------- main ------------------------------------------
if __name__ == "__main__":
    key = jax.random.PRNGKey(0)
    k_param, k_tok = jax.random.split(key)

    params = init_params(k_param)
    tokens = jax.random.randint(k_tok, (BATCH, SEQ), 0, VOCAB_SIZE, dtype=jnp.int32)
    src_batch_lens = jnp.array([SEQ, SEQ - 3], dtype=jnp.int32)

    out = tf_encoder_forward(params, tokens, src_batch_lens)
    out = jax.block_until_ready(out)

    assert out.shape == (BATCH, SEQ, D_MODEL)
    assert jnp.all(jnp.isfinite(out))
    print("KERNEL_OK")
</pallas_src>

<mosaic_0001>
module attributes {stable_mosaic.version = 11 : i64} {
  func.func @_encoder_block_kernel(%arg0: i32, %arg1: memref<2x1xi32, #tpu.memory_space<vmem>>, %arg2: memref<2x8x32xf32, #tpu.memory_space<vmem>>, %arg3: memref<32x96xf32, #tpu.memory_space<vmem>>, %arg4: memref<32x32xf32, #tpu.memory_space<vmem>>, %arg5: memref<32x64xf32, #tpu.memory_space<vmem>>, %arg6: memref<64x32xf32, #tpu.memory_space<vmem>>, %arg7: memref<8x128xf32, #tpu.memory_space<vmem>>, %arg8: memref<2x8x32xf32, #tpu.memory_space<vmem>>) attributes {dimension_semantics = [#tpu.dimension_semantics<arbitrary>], iteration_bounds = array<i64: 1>, scalar_prefetch = 0 : i64, scratch_operands = 0 : i64, tpu.core_type = #tpu.core_type<tc>, window_params = [{pipeline_mode = #tpu.pipeline_mode<synchronous>, transform_indices = @transform_0, window_bounds = array<i64: 2, 1>}, {pipeline_mode = #tpu.pipeline_mode<synchronous>, transform_indices = @transform_1, window_bounds = array<i64: 2, 8, 32>}, {pipeline_mode = #tpu.pipeline_mode<synchronous>, transform_indices = @transform_2, window_bounds = array<i64: 32, 96>}, {pipeline_mode = #tpu.pipeline_mode<synchronous>, transform_indices = @transform_3, window_bounds = array<i64: 32, 32>}, {pipeline_mode = #tpu.pipeline_mode<synchronous>, transform_indices = @transform_4, window_bounds = array<i64: 32, 64>}, {pipeline_mode = #tpu.pipeline_mode<synchronous>, transform_indices = @transform_5, window_bounds = array<i64: 64, 32>}, {pipeline_mode = #tpu.pipeline_mode<synchronous>, transform_indices = @transform_6, window_bounds = array<i64: 8, 128>}, {pipeline_mode = #tpu.pipeline_mode<synchronous>, transform_indices = @transform_7, window_bounds = array<i64: 2, 8, 32>}]} {
    %c0 = arith.constant 0 : index
    %c0_0 = arith.constant 0 : index
    %c0_1 = arith.constant 0 : index
    %0 = vector.load %arg2[%c0, %c0_0, %c0_1] : memref<2x8x32xf32, #tpu.memory_space<vmem>>, vector<2x8x32xf32>
    %1 = vector.shape_cast %0 : vector<2x8x32xf32> to vector<16x32xf32>
    %c0_2 = arith.constant 0 : index
    %c0_3 = arith.constant 0 : index
    %2 = vector.load %arg7[%c0_2, %c0_3] : memref<8x128xf32, #tpu.memory_space<vmem>>, vector<1x96xf32>
    %c1 = arith.constant 1 : index
    %c0_4 = arith.constant 0 : index
    %3 = vector.load %arg7[%c1, %c0_4] : memref<8x128xf32, #tpu.memory_space<vmem>>, vector<1x32xf32>
    %c2 = arith.constant 2 : index
    %c0_5 = arith.constant 0 : index
    %4 = vector.load %arg7[%c2, %c0_5] : memref<8x128xf32, #tpu.memory_space<vmem>>, vector<1x32xf32>
    %c3 = arith.constant 3 : index
    %c0_6 = arith.constant 0 : index
    %5 = vector.load %arg7[%c3, %c0_6] : memref<8x128xf32, #tpu.memory_space<vmem>>, vector<1x32xf32>
    %c4 = arith.constant 4 : index
    %c0_7 = arith.constant 0 : index
    %6 = vector.load %arg7[%c4, %c0_7] : memref<8x128xf32, #tpu.memory_space<vmem>>, vector<1x64xf32>
    %c5 = arith.constant 5 : index
    %c0_8 = arith.constant 0 : index
    %7 = vector.load %arg7[%c5, %c0_8] : memref<8x128xf32, #tpu.memory_space<vmem>>, vector<1x32xf32>
    %c6 = arith.constant 6 : index
    %c0_9 = arith.constant 0 : index
    %8 = vector.load %arg7[%c6, %c0_9] : memref<8x128xf32, #tpu.memory_space<vmem>>, vector<1x32xf32>
    %c7 = arith.constant 7 : index
    %c0_10 = arith.constant 0 : index
    %9 = vector.load %arg7[%c7, %c0_10] : memref<8x128xf32, #tpu.memory_space<vmem>>, vector<1x32xf32>
    %c0_11 = arith.constant 0 : index
    %c0_12 = arith.constant 0 : index
    %10 = vector.load %arg3[%c0_11, %c0_12] : memref<32x96xf32, #tpu.memory_space<vmem>>, vector<32x96xf32>
    %cst = arith.constant dense<0.000000e+00> : vector<16x96xf32>
    %11 = tpu.matmul %1, %10, %cst {dimension_numbers = #tpu.dot_dimension_numbers<[1], [0], [0], [1], [0, 0, 1, 1], [], []>} : vector<16x32xf32>, vector<32x96xf32>, vector<16x96xf32> -> vector<16x96xf32>
    %12 = vector.broadcast %2 : vector<1x96xf32> to vector<16x96xf32>
    %13 = arith.addf %11, %12 : vector<16x96xf32>
    %c0_13 = arith.constant 0 : index
    %c0_14 = arith.constant 0 : index
    %14 = vector.load %arg1[%c0_13, %c0_14] : memref<2x1xi32, #tpu.memory_space<vmem>>, vector<2x1xi32>
    %15 = tpu.iota {dimensions = array<i32: 1>} : vector<2x8xi32>
    %16 = vector.broadcast %14 : vector<2x1xi32> to vector<2x8xi32>
    %17 = arith.cmpi slt, %15, %16 : vector<2x8xi32>
    %cst_15 = arith.constant 0.000000e+00 : f32
    %cst_16 = arith.constant -1.000000e+30 : f32
    %18 = vector.broadcast %cst_15 : f32 to vector<2x8xf32>
    %19 = vector.broadcast %cst_16 : f32 to vector<2x8xf32>
    %20 = arith.select %17, %18, %19 : vector<2x8xi1>, vector<2x8xf32>
    %21 = vector.shape_cast %20 : vector<2x8xf32> to vector<2x1x8xf32>
    %c0_17 = arith.constant 0 : index
    %c0_18 = arith.constant 0 : index
    %22 = vector.load %arg4[%c0_17, %c0_18] : memref<32x32xf32, #tpu.memory_space<vmem>>, vector<32x32xf32>
    %cst_19 = arith.constant 0.000000e+00 : f32
    %23 = vector.broadcast %cst_19 : f32 to vector<16x32xf32>
    %24 = vector.extract_strided_slice %13 {offsets = [0, 0], sizes = [16, 8], strides = [1, 1]} : vector<16x96xf32> to vector<16x8xf32>
    %25 = vector.shape_cast %24 : vector<16x8xf32> to vector<2x8x8xf32>
    %26 = vector.extract_strided_slice %13 {offsets = [0, 32], sizes = [16, 8], strides = [1, 1]} : vector<16x96xf32> to vector<16x8xf32>
    %27 = vector.shape_cast %26 : vector<16x8xf32> to vector<2x8x8xf32>
    %28 = vector.extract_strided_slice %13 {offsets = [0, 64], sizes = [16, 8], strides = [1, 1]} : vector<16x96xf32> to vector<16x8xf32>
    %29 = vector.shape_cast %28 : vector<16x8xf32> to vector<2x8x8xf32>
    "tpu.trace_start"() <{level = 10 : i32, message = "bqd,bkd->bqk"}> : () -> ()
    %cst_20 = arith.constant dense<0.000000e+00> : vector<2x8x8xf32>
    %30 = tpu.matmul %25, %27, %cst_20 {dimension_numbers = #tpu.dot_dimension_numbers<[2], [2], [1], [1], [0, 0, 0, 1, 1, 1], [0], [0]>} : vector<2x8x8xf32>, vector<2x8x8xf32>, vector<2x8x8xf32> -> vector<2x8x8xf32>
    "tpu.trace_stop"() : () -> ()
    %cst_21 = arith.constant 0.353553385 : f32
    %31 = vector.broadcast %cst_21 : f32 to vector<2x8x8xf32>
    %32 = arith.mulf %30, %31 : vector<2x8x8xf32>
    %33 = vector.broadcast %21 : vector<2x1x8xf32> to vector<2x8x8xf32>
    %34 = arith.addf %32, %33 : vector<2x8x8xf32>
    %cst_22 = arith.constant dense<0xFF800000> : vector<2x8xf32>
    %35 = vector.multi_reduction <maximumf>, %34, %cst_22 [2] : vector<2x8x8xf32> to vector<2x8xf32>
    %36 = vector.shape_cast %35 : vector<2x8xf32> to vector<2x8x1xf32>
    %37 = vector.broadcast %36 : vector<2x8x1xf32> to vector<2x8x8xf32>
    %38 = arith.subf %34, %37 : vector<2x8x8xf32>
    %39 = math.exp %38 : vector<2x8x8xf32>
    %cst_23 = arith.constant dense<0.000000e+00> : vector<2x8xf32>
    %40 = vector.multi_reduction <add>, %39, %cst_23 [2] : vector<2x8x8xf32> to vector<2x8xf32>
    %41 = vector.shape_cast %40 : vector<2x8xf32> to vector<2x8x1xf32>
    %42 = tpu.reciprocal %41 {approx = true} : vector<2x8x1xf32> -> vector<2x8x1xf32>
    %43 = vector.broadcast %42 : vector<2x8x1xf32> to vector<2x8x8xf32>
    %44 = arith.mulf %39, %43 : vector<2x8x8xf32>
    "tpu.trace_start"() <{level = 10 : i32, message = "bqk,bkd->bqd"}> : () -> ()
    %cst_24 = arith.constant dense<0.000000e+00> : vector<2x8x8xf32>
    %45 = tpu.matmul %44, %29, %cst_24 {dimension_numbers = #tpu.dot_dimension_numbers<[2], [1], [1], [2], [0, 0, 0, 1, 1, 2], [0], [0]>} : vector<2x8x8xf32>, vector<2x8x8xf32>, vector<2x8x8xf32> -> vector<2x8x8xf32>
    "tpu.trace_stop"() : () -> ()
    %46 = vector.shape_cast %45 : vector<2x8x8xf32> to vector<16x8xf32>
    %47 = vector.extract_strided_slice %22 {offsets = [0, 0], sizes = [8, 32], strides = [1, 1]} : vector<32x32xf32> to vector<8x32xf32>
    %cst_25 = arith.constant dense<0.000000e+00> : vector<16x32xf32>
    %48 = tpu.matmul %46, %47, %cst_25 {dimension_numbers = #tpu.dot_dimension_numbers<[1], [0], [0], [1], [0, 0, 1, 1], [], []>} : vector<16x8xf32>, vector<8x32xf32>, vector<16x32xf32> -> vector<16x32xf32>
    %49 = arith.addf %23, %48 : vector<16x32xf32>
    %50 = vector.extract_strided_slice %13 {offsets = [0, 8], sizes = [16, 8], strides = [1, 1]} : vector<16x96xf32> to vector<16x8xf32>
    %51 = vector.shape_cast %50 : vector<16x8xf32> to vector<2x8x8xf32>
    %52 = vector.extract_strided_slice %13 {offsets = [0, 40], sizes = [16, 8], strides = [1, 1]} : vector<16x96xf32> to vector<16x8xf32>
    %53 = vector.shape_cast %52 : vector<16x8xf32> to vector<2x8x8xf32>
    %54 = vector.extract_strided_slice %13 {offsets = [0, 72], sizes = [16, 8], strides = [1, 1]} : vector<16x96xf32> to vector<16x8xf32>
    %55 = vector.shape_cast %54 : vector<16x8xf32> to vector<2x8x8xf32>
    "tpu.trace_start"() <{level = 10 : i32, message = "bqd,bkd->bqk"}> : () -> ()
    %cst_26 = arith.constant dense<0.000000e+00> : vector<2x8x8xf32>
    %56 = tpu.matmul %51, %53, %cst_26 {dimension_numbers = #tpu.dot_dimension_numbers<[2], [2], [1], [1], [0, 0, 0, 1, 1, 1], [0], [0]>} : vector<2x8x8xf32>, vector<2x8x8xf32>, vector<2x8x8xf32> -> vector<2x8x8xf32>
    "tpu.trace_stop"() : () -> ()
    %cst_27 = arith.constant 0.353553385 : f32
    %57 = vector.broadcast %cst_27 : f32 to vector<2x8x8xf32>
    %58 = arith.mulf %56, %57 : vector<2x8x8xf32>
    %59 = vector.broadcast %21 : vector<2x1x8xf32> to vector<2x8x8xf32>
    %60 = arith.addf %58, %59 : vector<2x8x8xf32>
    %cst_28 = arith.constant dense<0xFF800000> : vector<2x8xf32>
    %61 = vector.multi_reduction <maximumf>, %60, %cst_28 [2] : vector<2x8x8xf32> to vector<2x8xf32>
    %62 = vector.shape_cast %61 : vector<2x8xf32> to vector<2x8x1xf32>
    %63 = vector.broadcast %62 : vector<2x8x1xf32> to vector<2x8x8xf32>
    %64 = arith.subf %60, %63 : vector<2x8x8xf32>
    %65 = math.exp %64 : vector<2x8x8xf32>
    %cst_29 = arith.constant dense<0.000000e+00> : vector<2x8xf32>
    %66 = vector.multi_reduction <add>, %65, %cst_29 [2] : vector<2x8x8xf32> to vector<2x8xf32>
    %67 = vector.shape_cast %66 : vector<2x8xf32> to vector<2x8x1xf32>
    %68 = tpu.reciprocal %67 {approx = true} : vector<2x8x1xf32> -> vector<2x8x1xf32>
    %69 = vector.broadcast %68 : vector<2x8x1xf32> to vector<2x8x8xf32>
    %70 = arith.mulf %65, %69 : vector<2x8x8xf32>
    "tpu.trace_start"() <{level = 10 : i32, message = "bqk,bkd->bqd"}> : () -> ()
    %cst_30 = arith.constant dense<0.000000e+00> : vector<2x8x8xf32>
    %71 = tpu.matmul %70, %55, %cst_30 {dimension_numbers = #tpu.dot_dimension_numbers<[2], [1], [1], [2], [0, 0, 0, 1, 1, 2], [0], [0]>} : vector<2x8x8xf32>, vector<2x8x8xf32>, vector<2x8x8xf32> -> vector<2x8x8xf32>
    "tpu.trace_stop"() : () -> ()
    %72 = vector.shape_cast %71 : vector<2x8x8xf32> to vector<16x8xf32>
    %73 = vector.extract_strided_slice %22 {offsets = [8, 0], sizes = [8, 32], strides = [1, 1]} : vector<32x32xf32> to vector<8x32xf32>
    %cst_31 = arith.constant dense<0.000000e+00> : vector<16x32xf32>
    %74 = tpu.matmul %72, %73, %cst_31 {dimension_numbers = #tpu.dot_dimension_numbers<[1], [0], [0], [1], [0, 0, 1, 1], [], []>} : vector<16x8xf32>, vector<8x32xf32>, vector<16x32xf32> -> vector<16x32xf32>
    %75 = arith.addf %49, %74 : vector<16x32xf32>
    %76 = vector.extract_strided_slice %13 {offsets = [0, 16], sizes = [16, 8], strides = [1, 1]} : vector<16x96xf32> to vector<16x8xf32>
    %77 = vector.shape_cast %76 : vector<16x8xf32> to vector<2x8x8xf32>
    %78 = vector.extract_strided_slice %13 {offsets = [0, 48], sizes = [16, 8], strides = [1, 1]} : vector<16x96xf32> to vector<16x8xf32>
    %79 = vector.shape_cast %78 : vector<16x8xf32> to vector<2x8x8xf32>
    %80 = vector.extract_strided_slice %13 {offsets = [0, 80], sizes = [16, 8], strides = [1, 1]} : vector<16x96xf32> to vector<16x8xf32>
    %81 = vector.shape_cast %80 : vector<16x8xf32> to vector<2x8x8xf32>
    "tpu.trace_start"() <{level = 10 : i32, message = "bqd,bkd->bqk"}> : () -> ()
    %cst_32 = arith.constant dense<0.000000e+00> : vector<2x8x8xf32>
    %82 = tpu.matmul %77, %79, %cst_32 {dimension_numbers = #tpu.dot_dimension_numbers<[2], [2], [1], [1], [0, 0, 0, 1, 1, 1], [0], [0]>} : vector<2x8x8xf32>, vector<2x8x8xf32>, vector<2x8x8xf32> -> vector<2x8x8xf32>
    "tpu.trace_stop"() : () -> ()
    %cst_33 = arith.constant 0.353553385 : f32
    %83 = vector.broadcast %cst_33 : f32 to vector<2x8x8xf32>
    %84 = arith.mulf %82, %83 : vector<2x8x8xf32>
    %85 = vector.broadcast %21 : vector<2x1x8xf32> to vector<2x8x8xf32>
    %86 = arith.addf %84, %85 : vector<2x8x8xf32>
    %cst_34 = arith.constant dense<0xFF800000> : vector<2x8xf32>
    %87 = vector.multi_reduction <maximumf>, %86, %cst_34 [2] : vector<2x8x8xf32> to vector<2x8xf32>
    %88 = vector.shape_cast %87 : vector<2x8xf32> to vector<2x8x1xf32>
    %89 = vector.broadcast %88 : vector<2x8x1xf32> to vector<2x8x8xf32>
    %90 = arith.subf %86, %89 : vector<2x8x8xf32>
    %91 = math.exp %90 : vector<2x8x8xf32>
    %cst_35 = arith.constant dense<0.000000e+00> : vector<2x8xf32>
    %92 = vector.multi_reduction <add>, %91, %cst_35 [2] : vector<2x8x8xf32> to vector<2x8xf32>
    %93 = vector.shape_cast %92 : vector<2x8xf32> to vector<2x8x1xf32>
    %94 = tpu.reciprocal %93 {approx = true} : vector<2x8x1xf32> -> vector<2x8x1xf32>
    %95 = vector.broadcast %94 : vector<2x8x1xf32> to vector<2x8x8xf32>
    %96 = arith.mulf %91, %95 : vector<2x8x8xf32>
    "tpu.trace_start"() <{level = 10 : i32, message = "bqk,bkd->bqd"}> : () -> ()
    %cst_36 = arith.constant dense<0.000000e+00> : vector<2x8x8xf32>
    %97 = tpu.matmul %96, %81, %cst_36 {dimension_numbers = #tpu.dot_dimension_numbers<[2], [1], [1], [2], [0, 0, 0, 1, 1, 2], [0], [0]>} : vector<2x8x8xf32>, vector<2x8x8xf32>, vector<2x8x8xf32> -> vector<2x8x8xf32>
    "tpu.trace_stop"() : () -> ()
    %98 = vector.shape_cast %97 : vector<2x8x8xf32> to vector<16x8xf32>
    %99 = vector.extract_strided_slice %22 {offsets = [16, 0], sizes = [8, 32], strides = [1, 1]} : vector<32x32xf32> to vector<8x32xf32>
    %cst_37 = arith.constant dense<0.000000e+00> : vector<16x32xf32>
    %100 = tpu.matmul %98, %99, %cst_37 {dimension_numbers = #tpu.dot_dimension_numbers<[1], [0], [0], [1], [0, 0, 1, 1], [], []>} : vector<16x8xf32>, vector<8x32xf32>, vector<16x32xf32> -> vector<16x32xf32>
    %101 = arith.addf %75, %100 : vector<16x32xf32>
    %102 = vector.extract_strided_slice %13 {offsets = [0, 24], sizes = [16, 8], strides = [1, 1]} : vector<16x96xf32> to vector<16x8xf32>
    %103 = vector.shape_cast %102 : vector<16x8xf32> to vector<2x8x8xf32>
    %104 = vector.extract_strided_slice %13 {offsets = [0, 56], sizes = [16, 8], strides = [1, 1]} : vector<16x96xf32> to vector<16x8xf32>
    %105 = vector.shape_cast %104 : vector<16x8xf32> to vector<2x8x8xf32>
    %106 = vector.extract_strided_slice %13 {offsets = [0, 88], sizes = [16, 8], strides = [1, 1]} : vector<16x96xf32> to vector<16x8xf32>
    %107 = vector.shape_cast %106 : vector<16x8xf32> to vector<2x8x8xf32>
    "tpu.trace_start"() <{level = 10 : i32, message = "bqd,bkd->bqk"}> : () -> ()
    %cst_38 = arith.constant dense<0.000000e+00> : vector<2x8x8xf32>
    %108 = tpu.matmul %103, %105, %cst_38 {dimension_numbers = #tpu.dot_dimension_numbers<[2], [2], [1], [1], [0, 0, 0, 1, 1, 1], [0], [0]>} : vector<2x8x8xf32>, vector<2x8x8xf32>, vector<2x8x8xf32> -> vector<2x8x8xf32>
    "tpu.trace_stop"() : () -> ()
    %cst_39 = arith.constant 0.353553385 : f32
    %109 = vector.broadcast %cst_39 : f32 to vector<2x8x8xf32>
    %110 = arith.mulf %108, %109 : vector<2x8x8xf32>
    %111 = vector.broadcast %21 : vector<2x1x8xf32> to vector<2x8x8xf32>
    %112 = arith.addf %110, %111 : vector<2x8x8xf32>
    %cst_40 = arith.constant dense<0xFF800000> : vector<2x8xf32>
    %113 = vector.multi_reduction <maximumf>, %112, %cst_40 [2] : vector<2x8x8xf32> to vector<2x8xf32>
    %114 = vector.shape_cast %113 : vector<2x8xf32> to vector<2x8x1xf32>
    %115 = vector.broadcast %114 : vector<2x8x1xf32> to vector<2x8x8xf32>
    %116 = arith.subf %112, %115 : vector<2x8x8xf32>
    %117 = math.exp %116 : vector<2x8x8xf32>
    %cst_41 = arith.constant dense<0.000000e+00> : vector<2x8xf32>
    %118 = vector.multi_reduction <add>, %117, %cst_41 [2] : vector<2x8x8xf32> to vector<2x8xf32>
    %119 = vector.shape_cast %118 : vector<2x8xf32> to vector<2x8x1xf32>
    %120 = tpu.reciprocal %119 {approx = true} : vector<2x8x1xf32> -> vector<2x8x1xf32>
    %121 = vector.broadcast %120 : vector<2x8x1xf32> to vector<2x8x8xf32>
    %122 = arith.mulf %117, %121 : vector<2x8x8xf32>
    "tpu.trace_start"() <{level = 10 : i32, message = "bqk,bkd->bqd"}> : () -> ()
    %cst_42 = arith.constant dense<0.000000e+00> : vector<2x8x8xf32>
    %123 = tpu.matmul %122, %107, %cst_42 {dimension_numbers = #tpu.dot_dimension_numbers<[2], [1], [1], [2], [0, 0, 0, 1, 1, 2], [0], [0]>} : vector<2x8x8xf32>, vector<2x8x8xf32>, vector<2x8x8xf32> -> vector<2x8x8xf32>
    "tpu.trace_stop"() : () -> ()
    %124 = vector.shape_cast %123 : vector<2x8x8xf32> to vector<16x8xf32>
    %125 = vector.extract_strided_slice %22 {offsets = [24, 0], sizes = [8, 32], strides = [1, 1]} : vector<32x32xf32> to vector<8x32xf32>
    %cst_43 = arith.constant dense<0.000000e+00> : vector<16x32xf32>
    %126 = tpu.matmul %124, %125, %cst_43 {dimension_numbers = #tpu.dot_dimension_numbers<[1], [0], [0], [1], [0, 0, 1, 1], [], []>} : vector<16x8xf32>, vector<8x32xf32>, vector<16x32xf32> -> vector<16x32xf32>
    %127 = arith.addf %101, %126 : vector<16x32xf32>
    %128 = vector.broadcast %3 : vector<1x32xf32> to vector<16x32xf32>
    %129 = arith.addf %127, %128 : vector<16x32xf32>
    %130 = arith.addf %1, %129 : vector<16x32xf32>
    %cst_44 = arith.constant dense<0.000000e+00> : vector<16xf32>
    %131 = vector.multi_reduction <add>, %130, %cst_44 [1] : vector<16x32xf32> to vector<16xf32>
    %132 = vector.shape_cast %131 : vector<16xf32> to vector<16x1xf32>
    %cst_45 = arith.constant 3.200000e+01 : f32
    %133 = vector.broadcast %cst_45 : f32 to vector<16x1xf32>
    %134 = arith.divf %132, %133 : vector<16x1xf32>
    %135 = vector.broadcast %134 : vector<16x1xf32> to vector<16x32xf32>
    %136 = arith.subf %130, %135 : vector<16x32xf32>
    %137 = arith.mulf %136, %136 : vector<16x32xf32>
    %cst_46 = arith.constant dense<0.000000e+00> : vector<16xf32>
    %138 = vector.multi_reduction <add>, %137, %cst_46 [1] : vector<16x32xf32> to vector<16xf32>
    %139 = vector.shape_cast %138 : vector<16xf32> to vector<16x1xf32>
    %cst_47 = arith.constant 3.200000e+01 : f32
    %140 = vector.broadcast %cst_47 : f32 to vector<16x1xf32>
    %141 = arith.divf %139, %140 : vector<16x1xf32>
    %142 = vector.broadcast %134 : vector<16x1xf32> to vector<16x32xf32>
    %143 = arith.subf %130, %142 : vector<16x32xf32>
    %cst_48 = arith.constant 9.99999974E-6 : f32
    %144 = vector.broadcast %cst_48 : f32 to vector<16x1xf32>
    %145 = arith.addf %141, %144 : vector<16x1xf32>
    %146 = math.rsqrt %145 : vector<16x1xf32>
    %147 = vector.broadcast %146 : vector<16x1xf32> to vector<16x32xf32>
    %148 = arith.mulf %143, %147 : vector<16x32xf32>
    %149 = vector.broadcast %4 : vector<1x32xf32> to vector<16x32xf32>
    %150 = arith.mulf %148, %149 : vector<16x32xf32>
    %151 = vector.broadcast %5 : vector<1x32xf32> to vector<16x32xf32>
    %152 = arith.addf %150, %151 : vector<16x32xf32>
    %c0_49 = arith.constant 0 : index
    %c0_50 = arith.constant 0 : index
    %153 = vector.load %arg5[%c0_49, %c0_50] : memref<32x64xf32, #tpu.memory_space<vmem>>, vector<32x64xf32>
    %cst_51 = arith.constant dense<0.000000e+00> : vector<16x64xf32>
    %154 = tpu.matmul %152, %153, %cst_51 {dimension_numbers = #tpu.dot_dimension_numbers<[1], [0], [0], [1], [0, 0, 1, 1], [], []>} : vector<16x32xf32>, vector<32x64xf32>, vector<16x64xf32> -> vector<16x64xf32>
    %155 = vector.broadcast %6 : vector<1x64xf32> to vector<16x64xf32>
    %156 = arith.addf %154, %155 : vector<16x64xf32>
    %cst_52 = arith.constant 0.000000e+00 : f32
    %157 = vector.broadcast %cst_52 : f32 to vector<16x64xf32>
    %158 = arith.maximumf %156, %157 : vector<16x64xf32>
    %c0_53 = arith.constant 0 : index
    %c0_54 = arith.constant 0 : index
    %159 = vector.load %arg6[%c0_53, %c0_54] : memref<64x32xf32, #tpu.memory_space<vmem>>, vector<64x32xf32>
    %cst_55 = arith.constant dense<0.000000e+00> : vector<16x32xf32>
    %160 = tpu.matmul %158, %159, %cst_55 {dimension_numbers = #tpu.dot_dimension_numbers<[1], [0], [0], [1], [0, 0, 1, 1], [], []>} : vector<16x64xf32>, vector<64x32xf32>, vector<16x32xf32> -> vector<16x32xf32>
    %161 = vector.broadcast %7 : vector<1x32xf32> to vector<16x32xf32>
    %162 = arith.addf %160, %161 : vector<16x32xf32>
    %163 = arith.addf %152, %162 : vector<16x32xf32>
    %cst_56 = arith.constant dense<0.000000e+00> : vector<16xf32>
    %164 = vector.multi_reduction <add>, %163, %cst_56 [1] : vector<16x32xf32> to vector<16xf32>
    %165 = vector.shape_cast %164 : vector<16xf32> to vector<16x1xf32>
    %cst_57 = arith.constant 3.200000e+01 : f32
    %166 = vector.broadcast %cst_57 : f32 to vector<16x1xf32>
    %167 = arith.divf %165, %166 : vector<16x1xf32>
    %168 = vector.broadcast %167 : vector<16x1xf32> to vector<16x32xf32>
    %169 = arith.subf %163, %168 : vector<16x32xf32>
    %170 = arith.mulf %169, %169 : vector<16x32xf32>
    %cst_58 = arith.constant dense<0.000000e+00> : vector<16xf32>
    %171 = vector.multi_reduction <add>, %170, %cst_58 [1] : vector<16x32xf32> to vector<16xf32>
    %172 = vector.shape_cast %171 : vector<16xf32> to vector<16x1xf32>
    %cst_59 = arith.constant 3.200000e+01 : f32
    %173 = vector.broadcast %cst_59 : f32 to vector<16x1xf32>
    %174 = arith.divf %172, %173 : vector<16x1xf32>
    %175 = vector.broadcast %167 : vector<16x1xf32> to vector<16x32xf32>
    %176 = arith.subf %163, %175 : vector<16x32xf32>
    %cst_60 = arith.constant 9.99999974E-6 : f32
    %177 = vector.broadcast %cst_60 : f32 to vector<16x1xf32>
    %178 = arith.addf %174, %177 : vector<16x1xf32>
    %179 = math.rsqrt %178 : vector<16x1xf32>
    %180 = vector.broadcast %179 : vector<16x1xf32> to vector<16x32xf32>
    %181 = arith.mulf %176, %180 : vector<16x32xf32>
    %182 = vector.broadcast %8 : vector<1x32xf32> to vector<16x32xf32>
    %183 = arith.mulf %181, %182 : vector<16x32xf32>
    %184 = vector.broadcast %9 : vector<1x32xf32> to vector<16x32xf32>
    %185 = arith.addf %183, %184 : vector<16x32xf32>
    %186 = vector.shape_cast %185 : vector<16x32xf32> to vector<2x8x32xf32>
    %c0_61 = arith.constant 0 : index
    %c0_62 = arith.constant 0 : index
    %c0_63 = arith.constant 0 : index
    %187 = vector.load %arg8[%c0_61, %c0_62, %c0_63] : memref<2x8x32xf32, #tpu.memory_space<vmem>>, vector<2x8x32xf32>
    tpu.vector_store %arg8[%c0_61, %c0_62, %c0_63], %186 {strides = array<i32>} : memref<2x8x32xf32, #tpu.memory_space<vmem>>, vector<2x8x32xf32>,
    return
  }
  func.func @transform_0(%arg0: i32) -> (i32, i32) {
    %c0_i32 = arith.constant 0 : i32
    %c0_i32_0 = arith.constant 0 : i32
    %c0_i32_1 = arith.constant 0 : i32
    return %c0_i32, %c0_i32_0 : i32, i32
  }
  func.func @transform_1(%arg0: i32) -> (i32, i32, i32) {
    %c0_i32 = arith.constant 0 : i32
    %c0_i32_0 = arith.constant 0 : i32
    %c0_i32_1 = arith.constant 0 : i32
    %c0_i32_2 = arith.constant 0 : i32
    return %c0_i32, %c0_i32_0, %c0_i32_1 : i32, i32, i32
  }
  func.func @transform_2(%arg0: i32) -> (i32, i32) {
    %c0_i32 = arith.constant 0 : i32
    %c0_i32_0 = arith.constant 0 : i32
    %c0_i32_1 = arith.constant 0 : i32
    return %c0_i32, %c0_i32_0 : i32, i32
  }
  func.func @transform_3(%arg0: i32) -> (i32, i32) {
    %c0_i32 = arith.constant 0 : i32
    %c0_i32_0 = arith.constant 0 : i32
    %c0_i32_1 = arith.constant 0 : i32
    return %c0_i32, %c0_i32_0 : i32, i32
  }
  func.func @transform_4(%arg0: i32) -> (i32, i32) {
    %c0_i32 = arith.constant 0 : i32
    %c0_i32_0 = arith.constant 0 : i32
    %c0_i32_1 = arith.constant 0 : i32
    return %c0_i32, %c0_i32_0 : i32, i32
  }
  func.func @transform_5(%arg0: i32) -> (i32, i32) {
    %c0_i32 = arith.constant 0 : i32
    %c0_i32_0 = arith.constant 0 : i32
    %c0_i32_1 = arith.constant 0 : i32
    return %c0_i32, %c0_i32_0 : i32, i32
  }
  func.func @transform_6(%arg0: i32) -> (i32, i32) {
    %c0_i32 = arith.constant 0 : i32
    %c0_i32_0 = arith.constant 0 : i32
    %c0_i32_1 = arith.constant 0 : i32
    return %c0_i32, %c0_i32_0 : i32, i32
  }
  func.func @transform_7(%arg0: i32) -> (i32, i32, i32) {
    %c0_i32 = arith.constant 0 : i32
    %c0_i32_0 = arith.constant 0 : i32
    %c0_i32_1 = arith.constant 0 : i32
    %c0_i32_2 = arith.constant 0 : i32
    return %c0_i32, %c0_i32_0, %c0_i32_1 : i32, i32, i32
  }
}

</mosaic_0001>

<llo_original>
// kernel: tf_encoder_forward.1
$region0: #{tf_encoder_forward.1}
  #allocation0 [shape = 'u32[]', space=smem, size = 0x4, offset = 0x4, fixed_abs, tag = 'smem constant byte address 0x4 - core index']
  #allocation1 [shape = 'u32[144,128]{1,0:T(1,128)}', space=vmem, size = 0x12000, scoped, tag = 'internal scratch']
  %s0 = inlined_call_operand.vmem [shape: s32[2,1], index: 0, kind: input, shape index: {}]
  %s1 = inlined_call_operand.vmem [shape: f32[2,8,32], index: 1, kind: input, shape index: {}]
  %s2 = inlined_call_operand.vmem [shape: f32[32,96], index: 2, kind: input, shape index: {}]
  %s3 = inlined_call_operand.vmem [shape: f32[32,32], index: 3, kind: input, shape index: {}]
  %s4 = inlined_call_operand.vmem [shape: f32[32,64], index: 4, kind: input, shape index: {}]
  %s5 = inlined_call_operand.vmem [shape: f32[64,32], index: 5, kind: input, shape index: {}]
  %s6 = inlined_call_operand.vmem [shape: f32[8,128], index: 6, kind: input, shape index: {}]
  %s7 = inlined_call_operand.hbm [shape: f32[2,8,32], index: 7, kind: output, shape index: {}]
  %s8 = sld [smem:[#allocation0]]
  $region38: #{tf_encoder_forward.1} parent=0
    _
  %s10 = ssub.s32 1, %s8
  %s11 = scalar_select 0, %s10, %s8
  $region1: #{tf_encoder_forward.1} parent=0
    #allocation2 [shape = 'u8[8192]{0}', space=vmem, size = 0x2000, scoped, tag = 'output window, operand 0, single buffered']
    #allocation3 [shape = 's32[1]{0}', space=sflag, size = 0x4, scoped, tag = 'scoped memory for tf_encoder_forward.1']
    %12 = vsyncpa [#allocation3], 0
    // Predicated region
    $region2: #{tf_encoder_forward.1} parent=1 // pred_check
      _
    $region3: #{tf_encoder_forward.1} parent=1 // pred_check_branch
      %14 = sbr.rel (0) target = $region5
    $region4: #{tf_encoder_forward.1} parent=1 // pred_region
      _
    $region5: #{tf_encoder_forward.1} parent=1 // pred_fallthru
      _
    // Predicated region
    $region6: #{tf_encoder_forward.1} parent=1 // pred_check
      _
    $region7: #{tf_encoder_forward.1} parent=1 // pred_check_branch
      %16 = sbr.rel (0) target = $region9
    $region8: #{tf_encoder_forward.1} parent=1 // pred_region
      _
    $region9: #{tf_encoder_forward.1} parent=1 // pred_fallthru
      _
    // Predicated region
    $region10: #{tf_encoder_forward.1} parent=1 // pred_check
      _
    $region11: #{tf_encoder_forward.1} parent=1 // pred_check_branch
      %18 = sbr.rel (0) target = $region13
    $region12: #{tf_encoder_forward.1} parent=1 // pred_region
      _
    $region13: #{tf_encoder_forward.1} parent=1 // pred_fallthru
      _
    // Predicated region
    $region14: #{tf_encoder_forward.1} parent=1 // pred_check
      _
    $region15: #{tf_encoder_forward.1} parent=1 // pred_check_branch
      %20 = sbr.rel (0) target = $region17
    $region16: #{tf_encoder_forward.1} parent=1 // pred_region
      _
    $region17: #{tf_encoder_forward.1} parent=1 // pred_fallthru
      _
    // Predicated region
    $region18: #{tf_encoder_forward.1} parent=1 // pred_check
      _
    $region19: #{tf_encoder_forward.1} parent=1 // pred_check_branch
      %22 = sbr.rel (0) target = $region21
    $region20: #{tf_encoder_forward.1} parent=1 // pred_region
      _
    $region21: #{tf_encoder_forward.1} parent=1 // pred_fallthru
      _
    // Predicated region
    $region22: #{tf_encoder_forward.1} parent=1 // pred_check
      _
    $region23: #{tf_encoder_forward.1} parent=1 // pred_check_branch
      %24 = sbr.rel (0) target = $region25
    $region24: #{tf_encoder_forward.1} parent=1 // pred_region
      _
    $region25: #{tf_encoder_forward.1} parent=1 // pred_fallthru
      _
    // Predicated region
    $region26: #{tf_encoder_forward.1} parent=1 // pred_check
      _
    $region27: #{tf_encoder_forward.1} parent=1 // pred_check_branch
      %26 = sbr.rel (0) target = $region29
    $region28: #{tf_encoder_forward.1} parent=1 // pred_region
      _
    $region29: #{tf_encoder_forward.1} parent=1 // pred_fallthru
      _
    %v27 = vld [vmem:[%s1] sm:$0xff]
    %v28 = vld [vmem:[%s1 + $0x8] sm:$0xff]
    %v29 = vld [vmem:[%s6] sm:$0x1]
    %v30 = vld [vmem:[%s6 + $0x1] sm:$0x1]
    %v31 = vld [vmem:[%s6 + $0x2] sm:$0x1]
    %v32 = vld [vmem:[%s6 + $0x3] sm:$0x1]
    %v33 = vld [vmem:[%s6 + $0x4] sm:$0x1]
    %v34 = vld [vmem:[%s6 + $0x5] sm:$0x1]
    %v35 = vld [vmem:[%s6 + $0x6] sm:$0x1]
    %v36 = vld [vmem:[%s6 + $0x7] sm:$0x1]
    %v37 = vld [vmem:[%s2] sm:$0xff]
    %v38 = vld [vmem:[%s2 + $0x8] sm:$0xff]
    %v39 = vld [vmem:[%s2 + $0x10] sm:$0xff]
    %v40 = vld [vmem:[%s2 + $0x18] sm:$0xff]
    %v41 = vlaneseq
    %v42 = vshrl.u32 %v41, 7
    %v43 = vsub.s32 0, %v42
    %v44 = vrot.slane %v29, %v43
    %vm45 = vcmask 261120
    %v47 = vsel %vm45, %v27, 0
    %v50 = vsel %vm45, %v28, 0
    %52 = vmatprep.subr.mxu0 0.0
    %53 = vmatpush1.msra.mxu0 %v37
    %54 = vmatprep.subr.mxu0 0.0
    %55 = vmatpush1.msra.mxu0 %v38
    %56 = vmatprep.subr.mxu0 0.0
    %57 = vmatpush1.msra.mxu0 %v39
    %58 = vmatprep.subr.mxu0 0.0
    %59 = vmatpush1.msra.mxu0 %v40
    %60 = vmatprep.subr.mxu0 0.0
    %61 = vmatpush1.msra.mxu0 0.0
    %62 = vmatprep.subr.mxu0 0.0
    %63 = vmatpush1.msra.mxu0 0.0
    %64 = vmatprep.subr.mxu0 0.0
    %65 = vmatpush1.msra.mxu0 0.0
    %66 = vmatprep.subr.mxu0 0.0
    %67 = vmatpush1.msra.mxu0 0.0
    %68 = vmatprep.subr.mxu0 0.0
    %69 = vmatpush1.msra.mxu0 0.0
    %70 = vmatprep.subr.mxu0 0.0
    %71 = vmatpush1.msra.mxu0 0.0
    %72 = vmatprep.subr.mxu0 0.0
    %73 = vmatpush1.msra.mxu0 0.0
    %74 = vmatprep.subr.mxu0 0.0
    %75 = vmatpush1.msra.mxu0 0.0
    %76 = vmatprep.subr.mxu0 0.0
    %77 = vmatpush1.msra.mxu0 0.0
    %78 = vmatprep.subr.mxu0 0.0
    %79 = vmatpush1.msra.mxu0 0.0
    %80 = vmatprep.subr.mxu0 0.0
    %81 = vmatpush1.msra.mxu0 0.0
    %82 = vmatprep.subr.mxu0 0.0
    %83 = vmatpush1.msra.mxu0 0.0
    %84 = vmatprep.subr.mxu0 0.0
    %85 = vmatpush1.msra.mxu0 0.0
    %86 = vmatprep.subr.mxu0 0.0
    %87 = vmatpush1.msra.mxu0 0.0
    %88 = vmatprep.subr.mxu0 0.0
    %89 = vmatpush1.msra.mxu0 0.0
    %90 = vmatprep.subr.mxu0 0.0
    %91 = vmatpush1.msra.mxu0 0.0
    %92 = vmatprep.subr.mxu0 0.0
    %93 = vmatpush1.msra.mxu0 0.0
    %94 = vmatprep.subr.mxu0 0.0
    %95 = vmatpush1.msra.mxu0 0.0
    %96 = vmatprep.subr.mxu0 0.0
    %97 = vmatpush1.msra.mxu0 0.0
    %98 = vmatprep.subr.mxu0 0.0
    %99 = vmatpush1.msra.mxu0 0.0
    %100 = vmatprep.subr.mxu0 0.0
    %101 = vmatpush1.msra.mxu0 0.0
    %102 = vmatprep.subr.mxu0 0.0
    %103 = vmatpush1.msra.mxu0 0.0
    %104 = vmatprep.subr.mxu0 0.0
    %105 = vmatpush1.msra.mxu0 0.0
    %106 = vmatprep.subr.mxu0 0.0
    %107 = vmatpush1.msra.mxu0 0.0
    %108 = vmatprep.subr.mxu0 0.0
    %109 = vmatpush1.msra.mxu0 0.0
    %110 = vmatprep.subr.mxu0 0.0
    %111 = vmatpush1.msra.mxu0 0.0
    %112 = vmatprep.subr.mxu0 0.0
    %113 = vmatpush1.msra.mxu0 0.0
    %114 = vmatprep.subr.mxu0 0.0
    %115 = vmatpush1.msra.mxu0 0.0
    %116 = vmatprep.mubr.f32.mxu0 0.0
    %117 = vmatmul.mubr.f32.gmra.mrb[0].mxu0 %v47
    %v118 = vpop.f32.mrb[0].mxu0
    %v119 = vadd.f32 %v44, %v118
    %v120 = vpop.f32.mrb[0].mxu0
    %121 = vmatprep.mubr.f32.mxu0 0.0
    %122 = vmatmul.mubr.f32.gmra.mrb[0].mxu0 %v50
    %v123 = vpop.f32.mrb[0].mxu0
    %v124 = vadd.f32 %v44, %v123
    %v125 = vpop.f32.mrb[0].mxu0
    %126 = vdwg.mxu0
    %v127 = vld [vmem:[%s0] sm:$0x3]
    %v128 = vlaneseq
    %v129 = vand.u32 %v128, 127
    %130 = vset.pattern.permute.xlu0 0
    %131 = vperm.xlu0 %130, %v127
    %v132 = vpop.permute.xlu0 %131
    %vm133 = vcmp.lt.s32.totalorder %v129, %v132
    %v134 = vsel %vm133, 0.0, -1e+30
    %v137 = vunpack.c.l.s4 1966171168
    %v138 = vunpack.c.0.s8 %v137
    %v139 = vlaneseq
    %v140 = vshrl.u32 %v139, 7
    %v141 = vsub.s32 %v138, %v140
    %v142 = vrot.slane %v134, %v141
    %v143 = vcombine.high %v142, %v142
    %v145 = vunpack.c.l.s4 1966171168
    %v146 = vunpack.c.0.s8 %v145
    %v147 = vlaneseq
    %v148 = vshrl.u32 %v147, 7
    %v149 = vsub.s32 %v146, %v148
    %v150 = vrot.slane %v142, %v149
    %v152 = vunpack.c.l.s4 1966171168
    %v153 = vunpack.c.0.s8 %v152
    %v154 = vlaneseq
    %v155 = vshrl.u32 %v154, 7
    %v156 = vsub.s32 %v153, %v155
    %v157 = vrot.slane %v143, %v156
    %v158 = vld [vmem:[%s3] sm:$0xff]
    %v159 = vld [vmem:[%s3 + $0x8] sm:$0xff]
    %v160 = vld [vmem:[%s3 + $0x10] sm:$0xff]
    %v161 = vld [vmem:[%s3 + $0x18] sm:$0xff]
    %163 = vrot.lane.b32.xlu0 %v119, 96
    %v164 = vpop.permute.xlu0 %163
    %vm165 = vcmask 64512
    %v166 = vsel %vm165, %v119, 0
    %v168 = vsel %vm165, %v164, 0
    %170 = vmatprep.subr.mxu0 0.0
    %171 = vmatpush1.xpose.msra.mxu0 %v168
    %172 = vmatprep.subr.mxu0 0.0
    %173 = vmatpush1.xpose.msra.mxu0 0.0
    %174 = vmatprep.subr.mxu0 0.0
    %175 = vmatpush1.xpose.msra.mxu0 0.0
    %176 = vmatprep.subr.mxu0 0.0
    %177 = vmatpush1.xpose.msra.mxu0 0.0
    %178 = vmatprep.subr.mxu0 0.0
    %179 = vmatpush1.xpose.msra.mxu0 0.0
    %180 = vmatprep.subr.mxu0 0.0
    %181 = vmatpush1.xpose.msra.mxu0 0.0
    %182 = vmatprep.subr.mxu0 0.0
    %183 = vmatpush1.xpose.msra.mxu0 0.0
    %184 = vmatprep.subr.mxu0 0.0
    %185 = vmatpush1.xpose.msra.mxu0 0.0
    %186 = vmatprep.subr.mxu0 0.0
    %187 = vmatpush1.xpose.msra.mxu0 0.0
    %188 = vmatprep.subr.mxu0 0.0
    %189 = vmatpush1.xpose.msra.mxu0 0.0
    %190 = vmatprep.subr.mxu0 0.0
    %191 = vmatpush1.xpose.msra.mxu0 0.0
    %192 = vmatprep.subr.mxu0 0.0
    %193 = vmatpush1.xpose.msra.mxu0 0.0
    %194 = vmatprep.subr.mxu0 0.0
    %195 = vmatpush1.xpose.msra.mxu0 0.0
    %196 = vmatprep.subr.mxu0 0.0
    %197 = vmatpush1.xpose.msra.mxu0 0.0
    %198 = vmatprep.subr.mxu0 0.0
    %199 = vmatpush1.xpose.msra.mxu0 0.0
    %200 = vmatprep.subr.mxu0 0.0
    %201 = vmatpush1.xpose.msra.mxu0 0.0
    %202 = vmatprep.subr.mxu0 0.0
    %203 = vmatpush1.xpose.msra.mxu0 0.0
    %204 = vmatprep.subr.mxu0 0.0
    %205 = vmatpush1.xpose.msra.mxu0 0.0
    %206 = vmatprep.subr.mxu0 0.0
    %207 = vmatpush1.xpose.msra.mxu0 0.0
    %208 = vmatprep.subr.mxu0 0.0
    %209 = vmatpush1.xpose.msra.mxu0 0.0
    %210 = vmatprep.subr.mxu0 0.0
    %211 = vmatpush1.xpose.msra.mxu0 0.0
    %212 = vmatprep.subr.mxu0 0.0
    %213 = vmatpush1.xpose.msra.mxu0 0.0
    %214 = vmatprep.subr.mxu0 0.0
    %215 = vmatpush1.xpose.msra.mxu0 0.0
    %216 = vmatprep.subr.mxu0 0.0
    %217 = vmatpush1.xpose.msra.mxu0 0.0
    %218 = vmatprep.subr.mxu0 0.0
    %219 = vmatpush1.xpose.msra.mxu0 0.0
    %220 = vmatprep.subr.mxu0 0.0
    %221 = vmatpush1.xpose.msra.mxu0 0.0
    %222 = vmatprep.subr.mxu0 0.0
    %223 = vmatpush1.xpose.msra.mxu0 0.0
    %224 = vmatprep.subr.mxu0 0.0
    %225 = vmatpush1.xpose.msra.mxu0 0.0
    %226 = vmatprep.subr.mxu0 0.0
    %227 = vmatpush1.xpose.msra.mxu0 0.0
    %228 = vmatprep.subr.mxu0 0.0
    %229 = vmatpush1.xpose.msra.mxu0 0.0
    %230 = vmatprep.subr.mxu0 0.0
    %231 = vmatpush1.xpose.msra.mxu0 0.0
    %232 = vmatprep.subr.mxu0 0.0
    %233 = vmatpush1.xpose.msra.mxu0 0.0
    %234 = vmatprep.mubr.f32.mxu0 0.0
    %235 = vmatmul.mubr.f32.gmra.mrb[0].mxu0 %v166
    %v236 = vpop.f32.mrb[0].mxu0
    %v237 = vadd.f32 0.0, %v236
    %v238 = vpop.f32.mrb[0].mxu0
    %239 = vdwg.mxu0
    %241 = vrot.lane.b32.xlu0 %v124, 96
    %v242 = vpop.permute.xlu0 %241
    %v243 = vsel %vm165, %v124, 0
    %v245 = vsel %vm165, %v242, 0
    %247 = vmatprep.subr.mxu0 0.0
    %248 = vmatpush1.xpose.msra.mxu0 %v245
    %249 = vmatprep.subr.mxu0 0.0
    %250 = vmatpush1.xpose.msra.mxu0 0.0
    %251 = vmatprep.subr.mxu0 0.0
    %252 = vmatpush1.xpose.msra.mxu0 0.0
    %253 = vmatprep.subr.mxu0 0.0
    %254 = vmatpush1.xpose.msra.mxu0 0.0
    %255 = vmatprep.subr.mxu0 0.0
    %256 = vmatpush1.xpose.msra.mxu0 0.0
    %257 = vmatprep.subr.mxu0 0.0
    %258 = vmatpush1.xpose.msra.mxu0 0.0
    %259 = vmatprep.subr.mxu0 0.0
    %260 = vmatpush1.xpose.msra.mxu0 0.0
    %261 = vmatprep.subr.mxu0 0.0
    %262 = vmatpush1.xpose.msra.mxu0 0.0
    %263 = vmatprep.subr.mxu0 0.0
    %264 = vmatpush1.xpose.msra.mxu0 0.0
    %265 = vmatprep.subr.mxu0 0.0
    %266 = vmatpush1.xpose.msra.mxu0 0.0
    %267 = vmatprep.subr.mxu0 0.0
    %268 = vmatpush1.xpose.msra.mxu0 0.0
    %269 = vmatprep.subr.mxu0 0.0
    %270 = vmatpush1.xpose.msra.mxu0 0.0
    %271 = vmatprep.subr.mxu0 0.0
    %272 = vmatpush1.xpose.msra.mxu0 0.0
    %273 = vmatprep.subr.mxu0 0.0
    %274 = vmatpush1.xpose.msra.mxu0 0.0
    %275 = vmatprep.subr.mxu0 0.0
    %276 = vmatpush1.xpose.msra.mxu0 0.0
    %277 = vmatprep.subr.mxu0 0.0
    %278 = vmatpush1.xpose.msra.mxu0 0.0
    %279 = vmatprep.subr.mxu0 0.0
    %280 = vmatpush1.xpose.msra.mxu0 0.0
    %281 = vmatprep.subr.mxu0 0.0
    %282 = vmatpush1.xpose.msra.mxu0 0.0
    %283 = vmatprep.subr.mxu0 0.0
    %284 = vmatpush1.xpose.msra.mxu0 0.0
    %285 = vmatprep.subr.mxu0 0.0
    %286 = vmatpush1.xpose.msra.mxu0 0.0
    %287 = vmatprep.subr.mxu0 0.0
    %288 = vmatpush1.xpose.msra.mxu0 0.0
    %289 = vmatprep.subr.mxu0 0.0
    %290 = vmatpush1.xpose.msra.mxu0 0.0
    %291 = vmatprep.subr.mxu0 0.0
    %292 = vmatpush1.xpose.msra.mxu0 0.0
    %293 = vmatprep.subr.mxu0 0.0
    %294 = vmatpush1.xpose.msra.mxu0 0.0
    %295 = vmatprep.subr.mxu0 0.0
    %296 = vmatpush1.xpose.msra.mxu0 0.0
    %297 = vmatprep.subr.mxu0 0.0
    %298 = vmatpush1.xpose.msra.mxu0 0.0
    %299 = vmatprep.subr.mxu0 0.0
    %300 = vmatpush1.xpose.msra.mxu0 0.0
    %301 = vmatprep.subr.mxu0 0.0
    %302 = vmatpush1.xpose.msra.mxu0 0.0
    %303 = vmatprep.subr.mxu0 0.0
    %304 = vmatpush1.xpose.msra.mxu0 0.0
    %305 = vmatprep.subr.mxu0 0.0
    %306 = vmatpush1.xpose.msra.mxu0 0.0
    %307 = vmatprep.subr.mxu0 0.0
    %308 = vmatpush1.xpose.msra.mxu0 0.0
    %309 = vmatprep.subr.mxu0 0.0
    %310 = vmatpush1.xpose.msra.mxu0 0.0
    %311 = vmatprep.mubr.f32.mxu0 0.0
    %312 = vmatmul.mubr.f32.gmra.mrb[0].mxu0 %v243
    %v313 = vpop.f32.mrb[0].mxu0
    %v314 = vadd.f32 0.0, %v313
    %v315 = vpop.f32.mrb[0].mxu0
    %316 = vdwg.mxu0
    %v317 = vmul.f32 %v237, 0.35355338
    %v318 = vmul.f32 %v314, 0.35355338
    %v319 = vlaneseq
    %v320 = vshrl.u32 %v319, 7
    %v321 = vsub.s32 0, %v320
    %v322 = vrot.slane %v150, %v321
    %v323 = vlaneseq
    %v324 = vshrl.u32 %v323, 7
    %v325 = vsub.s32 0, %v324
    %v326 = vrot.slane %v157, %v325
    %v329 = vadd.f32 %v317, %v322
    %v330 = vadd.f32 %v318, %v326
    %v331 = vsel %vm165, %v329, -inf
    %332 = vmax.xlane.f32.xlu0 %v331
    %v333 = vpop.xlane.xlu0 %332
    %v334 = vsel %vm165, %v330, -inf
    %335 = vmax.xlane.f32.xlu0 %v334
    %v336 = vpop.xlane.xlu0 %335
    %v337 = vsub.f32 %v329, %v333
    %v338 = vsub.f32 %v330, %v336
    %v339 = vmul.f32 %v337, 1.442695
    %v340 = vpow.pop %v339
    %v341 = vmul.f32 %v338, 1.442695
    %v342 = vpow.pop %v341
    %v343 = vsel %vm165, %v340, 0.0
    %344 = vadd.xlane.f32.xlu0 %v343
    %v345 = vpop.xlane.xlu0 %344
    %v346 = vsel %vm165, %v342, 0.0
    %347 = vadd.xlane.f32.xlu0 %v346
    %v348 = vpop.xlane.xlu0 %347
    %v349 = vrcp.pop %v345
    %v350 = vrcp.pop %v348
    %v351 = vmul.f32 %v340, %v349
    %v352 = vmul.f32 %v342, %v350
    %353 = vrot.lane.b32.xlu0 %v119, 64
    %v354 = vpop.permute.xlu0 %353
    %v357 = vsel %vm165, %v351, 0
    %359 = vmatprep.subr.mxu0 0.0
    %360 = vmatpush1.msra.mxu0 %v354
    %361 = vmatprep.subr.mxu0 0.0
    %362 = vmatpush1.msra.mxu0 0.0
    %363 = vmatprep.subr.mxu0 0.0
    %364 = vmatpush1.msra.mxu0 0.0
    %365 = vmatprep.subr.mxu0 0.0
    %366 = vmatpush1.msra.mxu0 0.0
    %367 = vmatprep.subr.mxu0 0.0
    %368 = vmatpush1.msra.mxu0 0.0
    %369 = vmatprep.subr.mxu0 0.0
    %370 = vmatpush1.msra.mxu0 0.0
    %371 = vmatprep.subr.mxu0 0.0
    %372 = vmatpush1.msra.mxu0 0.0
    %373 = vmatprep.subr.mxu0 0.0
    %374 = vmatpush1.msra.mxu0 0.0
    %375 = vmatprep.subr.mxu0 0.0
    %376 = vmatpush1.msra.mxu0 0.0
    %377 = vmatprep.subr.mxu0 0.0
    %378 = vmatpush1.msra.mxu0 0.0
    %379 = vmatprep.subr.mxu0 0.0
    %380 = vmatpush1.msra.mxu0 0.0
    %381 = vmatprep.subr.mxu0 0.0
    %382 = vmatpush1.msra.mxu0 0.0
    %383 = vmatprep.subr.mxu0 0.0
    %384 = vmatpush1.msra.mxu0 0.0
    %385 = vmatprep.subr.mxu0 0.0
    %386 = vmatpush1.msra.mxu0 0.0
    %387 = vmatprep.subr.mxu0 0.0
    %388 = vmatpush1.msra.mxu0 0.0
    %389 = vmatprep.subr.mxu0 0.0
    %390 = vmatpush1.msra.mxu0 0.0
    %391 = vmatprep.subr.mxu0 0.0
    %392 = vmatpush1.msra.mxu0 0.0
    %393 = vmatprep.subr.mxu0 0.0
    %394 = vmatpush1.msra.mxu0 0.0
    %395 = vmatprep.subr.mxu0 0.0
    %396 = vmatpush1.msra.mxu0 0.0
    %397 = vmatprep.subr.mxu0 0.0
    %398 = vmatpush1.msra.mxu0 0.0
    %399 = vmatprep.subr.mxu0 0.0
    %400 = vmatpush1.msra.mxu0 0.0
    %401 = vmatprep.subr.mxu0 0.0
    %402 = vmatpush1.msra.mxu0 0.0
    %403 = vmatprep.subr.mxu0 0.0
    %404 = vmatpush1.msra.mxu0 0.0
    %405 = vmatprep.subr.mxu0 0.0
    %406 = vmatpush1.msra.mxu0 0.0
    %407 = vmatprep.subr.mxu0 0.0
    %408 = vmatpush1.msra.mxu0 0.0
    %409 = vmatprep.subr.mxu0 0.0
    %410 = vmatpush1.msra.mxu0 0.0
    %411 = vmatprep.subr.mxu0 0.0
    %412 = vmatpush1.msra.mxu0 0.0
    %413 = vmatprep.subr.mxu0 0.0
    %414 = vmatpush1.msra.mxu0 0.0
    %415 = vmatprep.subr.mxu0 0.0
    %416 = vmatpush1.msra.mxu0 0.0
    %417 = vmatprep.subr.mxu0 0.0
    %418 = vmatpush1.msra.mxu0 0.0
    %419 = vmatprep.subr.mxu0 0.0
    %420 = vmatpush1.msra.mxu0 0.0
    %421 = vmatprep.subr.mxu0 0.0
    %422 = vmatpush1.msra.mxu0 0.0
    %423 = vmatprep.mubr.f32.mxu0 0.0
    %424 = vmatmul.mubr.f32.gmra.mrb[0].mxu0 %v357
    %v425 = vpop.f32.mrb[0].mxu0
    %v426 = vadd.f32 0.0, %v425
    %v427 = vpop.f32.mrb[0].mxu0
    %428 = vdwg.mxu0
    %429 = vrot.lane.b32.xlu0 %v124, 64
    %v430 = vpop.permute.xlu0 %429
    %v433 = vsel %vm165, %v352, 0
    %435 = vmatprep.subr.mxu0 0.0
    %436 = vmatpush1.msra.mxu0 %v430
    %437 = vmatprep.subr.mxu0 0.0
    %438 = vmatpush1.msra.mxu0 0.0
    %439 = vmatprep.subr.mxu0 0.0
    %440 = vmatpush1.msra.mxu0 0.0
    %441 = vmatprep.subr.mxu0 0.0
    %442 = vmatpush1.msra.mxu0 0.0
    %443 = vmatprep.subr.mxu0 0.0
    %444 = vmatpush1.msra.mxu0 0.0
    %445 = vmatprep.subr.mxu0 0.0
    %446 = vmatpush1.msra.mxu0 0.0
    %447 = vmatprep.subr.mxu0 0.0
    %448 = vmatpush1.msra.mxu0 0.0
    %449 = vmatprep.subr.mxu0 0.0
    %450 = vmatpush1.msra.mxu0 0.0
    %451 = vmatprep.subr.mxu0 0.0
    %452 = vmatpush1.msra.mxu0 0.0
    %453 = vmatprep.subr.mxu0 0.0
    %454 = vmatpush1.msra.mxu0 0.0
    %455 = vmatprep.subr.mxu0 0.0
    %456 = vmatpush1.msra.mxu0 0.0
    %457 = vmatprep.subr.mxu0 0.0
    %458 = vmatpush1.msra.mxu0 0.0
    %459 = vmatprep.subr.mxu0 0.0
    %460 = vmatpush1.msra.mxu0 0.0
    %461 = vmatprep.subr.mxu0 0.0
    %462 = vmatpush1.msra.mxu0 0.0
    %463 = vmatprep.subr.mxu0 0.0
    %464 = vmatpush1.msra.mxu0 0.0
    %465 = vmatprep.subr.mxu0 0.0
    %466 = vmatpush1.msra.mxu0 0.0
    %467 = vmatprep.subr.mxu0 0.0
    %468 = vmatpush1.msra.mxu0 0.0
    %469 = vmatprep.subr.mxu0 0.0
    %470 = vmatpush1.msra.mxu0 0.0
    %471 = vmatprep.subr.mxu0 0.0
    %472 = vmatpush1.msra.mxu0 0.0
    %473 = vmatprep.subr.mxu0 0.0
    %474 = vmatpush1.msra.mxu0 0.0
    %475 = vmatprep.subr.mxu0 0.0
    %476 = vmatpush1.msra.mxu0 0.0
    %477 = vmatprep.subr.mxu0 0.0
    %478 = vmatpush1.msra.mxu0 0.0
    %479 = vmatprep.subr.mxu0 0.0
    %480 = vmatpush1.msra.mxu0 0.0
    %481 = vmatprep.subr.mxu0 0.0
    %482 = vmatpush1.msra.mxu0 0.0
    %483 = vmatprep.subr.mxu0 0.0
    %484 = vmatpush1.msra.mxu0 0.0
    %485 = vmatprep.subr.mxu0 0.0
    %486 = vmatpush1.msra.mxu0 0.0
    %487 = vmatprep.subr.mxu0 0.0
    %488 = vmatpush1.msra.mxu0 0.0
    %489 = vmatprep.subr.mxu0 0.0
    %490 = vmatpush1.msra.mxu0 0.0
    %491 = vmatprep.subr.mxu0 0.0
    %492 = vmatpush1.msra.mxu0 0.0
    %493 = vmatprep.subr.mxu0 0.0
    %494 = vmatpush1.msra.mxu0 0.0
    %495 = vmatprep.subr.mxu0 0.0
    %496 = vmatpush1.msra.mxu0 0.0
    %497 = vmatprep.subr.mxu0 0.0
    %498 = vmatpush1.msra.mxu0 0.0
    %499 = vmatprep.mubr.f32.mxu0 0.0
    %500 = vmatmul.mubr.f32.gmra.mrb[0].mxu0 %v433
    %v501 = vpop.f32.mrb[0].mxu0
    %v502 = vadd.f32 0.0, %v501
    %v503 = vpop.f32.mrb[0].mxu0
    %504 = vdwg.mxu0
    %505 = vrot.lane.b32.xlu0 %v119, 120
    %v506 = vpop.permute.xlu0 %505
    %507 = vrot.lane.b32.xlu0 %v119, 88
    %v508 = vpop.permute.xlu0 %507
    %v509 = vsel %vm165, %v506, 0
    %v511 = vsel %vm165, %v508, 0
    %513 = vmatprep.subr.mxu0 0.0
    %514 = vmatpush1.xpose.msra.mxu0 %v511
    %515 = vmatprep.subr.mxu0 0.0
    %516 = vmatpush1.xpose.msra.mxu0 0.0
    %517 = vmatprep.subr.mxu0 0.0
    %518 = vmatpush1.xpose.msra.mxu0 0.0
    %519 = vmatprep.subr.mxu0 0.0
    %520 = vmatpush1.xpose.msra.mxu0 0.0
    %521 = vmatprep.subr.mxu0 0.0
    %522 = vmatpush1.xpose.msra.mxu0 0.0
    %523 = vmatprep.subr.mxu0 0.0
    %524 = vmatpush1.xpose.msra.mxu0 0.0
    %525 = vmatprep.subr.mxu0 0.0
    %526 = vmatpush1.xpose.msra.mxu0 0.0
    %527 = vmatprep.subr.mxu0 0.0
    %528 = vmatpush1.xpose.msra.mxu0 0.0
    %529 = vmatprep.subr.mxu0 0.0
    %530 = vmatpush1.xpose.msra.mxu0 0.0
    %531 = vmatprep.subr.mxu0 0.0
    %532 = vmatpush1.xpose.msra.mxu0 0.0
    %533 = vmatprep.subr.mxu0 0.0
    %534 = vmatpush1.xpose.msra.mxu0 0.0
    %535 = vmatprep.subr.mxu0 0.0
    %536 = vmatpush1.xpose.msra.mxu0 0.0
    %537 = vmatprep.subr.mxu0 0.0
    %538 = vmatpush1.xpose.msra.mxu0 0.0
    %539 = vmatprep.subr.mxu0 0.0
    %540 = vmatpush1.xpose.msra.mxu0 0.0
    %541 = vmatprep.subr.mxu0 0.0
    %542 = vmatpush1.xpose.msra.mxu0 0.0
    %543 = vmatprep.subr.mxu0 0.0
    %544 = vmatpush1.xpose.msra.mxu0 0.0
    %545 = vmatprep.subr.mxu0 0.0
    %546 = vmatpush1.xpose.msra.mxu0 0.0
    %547 = vmatprep.subr.mxu0 0.0
    %548 = vmatpush1.xpose.msra.mxu0 0.0
    %549 = vmatprep.subr.mxu0 0.0
    %550 = vmatpush1.xpose.msra.mxu0 0.0
    %551 = vmatprep.subr.mxu0 0.0
    %552 = vmatpush1.xpose.msra.mxu0 0.0
    %553 = vmatprep.subr.mxu0 0.0
    %554 = vmatpush1.xpose.msra.mxu0 0.0
    %555 = vmatprep.subr.mxu0 0.0
    %556 = vmatpush1.xpose.msra.mxu0 0.0
    %557 = vmatprep.subr.mxu0 0.0
    %558 = vmatpush1.xpose.msra.mxu0 0.0
    %559 = vmatprep.subr.mxu0 0.0
    %560 = vmatpush1.xpose.msra.mxu0 0.0
    %561 = vmatprep.subr.mxu0 0.0
    %562 = vmatpush1.xpose.msra.mxu0 0.0
    %563 = vmatprep.subr.mxu0 0.0
    %564 = vmatpush1.xpose.msra.mxu0 0.0
    %565 = vmatprep.subr.mxu0 0.0
    %566 = vmatpush1.xpose.msra.mxu0 0.0
    %567 = vmatprep.subr.mxu0 0.0
    %568 = vmatpush1.xpose.msra.mxu0 0.0
    %569 = vmatprep.subr.mxu0 0.0
    %570 = vmatpush1.xpose.msra.mxu0 0.0
    %571 = vmatprep.subr.mxu0 0.0
    %572 = vmatpush1.xpose.msra.mxu0 0.0
    %573 = vmatprep.subr.mxu0 0.0
    %574 = vmatpush1.xpose.msra.mxu0 0.0
    %575 = vmatprep.subr.mxu0 0.0
    %576 = vmatpush1.xpose.msra.mxu0 0.0
    %577 = vmatprep.mubr.f32.mxu0 0.0
    %578 = vmatmul.mubr.f32.gmra.mrb[0].mxu0 %v509
    %v579 = vpop.f32.mrb[0].mxu0
    %v580 = vadd.f32 0.0, %v579
    %v581 = vpop.f32.mrb[0].mxu0
    %582 = vdwg.mxu0
    %583 = vrot.lane.b32.xlu0 %v124, 120
    %v584 = vpop.permute.xlu0 %583
    %585 = vrot.lane.b32.xlu0 %v124, 88
    %v586 = vpop.permute.xlu0 %585
    %v587 = vsel %vm165, %v584, 0
    %v589 = vsel %vm165, %v586, 0
    %591 = vmatprep.subr.mxu0 0.0
    %592 = vmatpush1.xpose.msra.mxu0 %v589
    %593 = vmatprep.subr.mxu0 0.0
    %594 = vmatpush1.xpose.msra.mxu0 0.0
    %595 = vmatprep.subr.mxu0 0.0
    %596 = vmatpush1.xpose.msra.mxu0 0.0
    %597 = vmatprep.subr.mxu0 0.0
    %598 = vmatpush1.xpose.msra.mxu0 0.0
    %599 = vmatprep.subr.mxu0 0.0
    %600 = vmatpush1.xpose.msra.mxu0 0.0
    %601 = vmatprep.subr.mxu0 0.0
    %602 = vmatpush1.xpose.msra.mxu0 0.0
    %603 = vmatprep.subr.mxu0 0.0
    %604 = vmatpush1.xpose.msra.mxu0 0.0
    %605 = vmatprep.subr.mxu0 0.0
    %606 = vmatpush1.xpose.msra.mxu0 0.0
    %607 = vmatprep.subr.mxu0 0.0
    %608 = vmatpush1.xpose.msra.mxu0 0.0
    %609 = vmatprep.subr.mxu0 0.0
    %610 = vmatpush1.xpose.msra.mxu0 0.0
    %611 = vmatprep.subr.mxu0 0.0
    %612 = vmatpush1.xpose.msra.mxu0 0.0
    %613 = vmatprep.subr.mxu0 0.0
    %614 = vmatpush1.xpose.msra.mxu0 0.0
    %615 = vmatprep.subr.mxu0 0.0
    %616 = vmatpush1.xpose.msra.mxu0 0.0
    %617 = vmatprep.subr.mxu0 0.0
    %618 = vmatpush1.xpose.msra.mxu0 0.0
    %619 = vmatprep.subr.mxu0 0.0
    %620 = vmatpush1.xpose.msra.mxu0 0.0
    %621 = vmatprep.subr.mxu0 0.0
    %622 = vmatpush1.xpose.msra.mxu0 0.0
    %623 = vmatprep.subr.mxu0 0.0
    %624 = vmatpush1.xpose.msra.mxu0 0.0
    %625 = vmatprep.subr.mxu0 0.0
    %626 = vmatpush1.xpose.msra.mxu0 0.0
    %627 = vmatprep.subr.mxu0 0.0
    %628 = vmatpush1.xpose.msra.mxu0 0.0
    %629 = vmatprep.subr.mxu0 0.0
    %630 = vmatpush1.xpose.msra.mxu0 0.0
    %631 = vmatprep.subr.mxu0 0.0
    %632 = vmatpush1.xpose.msra.mxu0 0.0
    %633 = vmatprep.subr.mxu0 0.0
    %634 = vmatpush1.xpose.msra.mxu0 0.0
    %635 = vmatprep.subr.mxu0 0.0
    %636 = vmatpush1.xpose.msra.mxu0 0.0
    %637 = vmatprep.subr.mxu0 0.0
    %638 = vmatpush1.xpose.msra.mxu0 0.0
    %639 = vmatprep.subr.mxu0 0.0
    %640 = vmatpush1.xpose.msra.mxu0 0.0
    %641 = vmatprep.subr.mxu0 0.0
    %642 = vmatpush1.xpose.msra.mxu0 0.0
    %643 = vmatprep.subr.mxu0 0.0
    %644 = vmatpush1.xpose.msra.mxu0 0.0
    %645 = vmatprep.subr.mxu0 0.0
    %646 = vmatpush1.xpose.msra.mxu0 0.0
    %647 = vmatprep.subr.mxu0 0.0
    %648 = vmatpush1.xpose.msra.mxu0 0.0
    %649 = vmatprep.subr.mxu0 0.0
    %650 = vmatpush1.xpose.msra.mxu0 0.0
    %651 = vmatprep.subr.mxu0 0.0
    %652 = vmatpush1.xpose.msra.mxu0 0.0
    %653 = vmatprep.subr.mxu0 0.0
    %654 = vmatpush1.xpose.msra.mxu0 0.0
    %655 = vmatprep.mubr.f32.mxu0 0.0
    %656 = vmatmul.mubr.f32.gmra.mrb[0].mxu0 %v587
    %v657 = vpop.f32.mrb[0].mxu0
    %v658 = vadd.f32 0.0, %v657
    %v659 = vpop.f32.mrb[0].mxu0
    %660 = vdwg.mxu0
    %v661 = vmul.f32 %v580, 0.35355338
    %v662 = vmul.f32 %v658, 0.35355338
    %v663 = vadd.f32 %v661, %v322
    %v664 = vadd.f32 %v662, %v326
    %v665 = vsel %vm165, %v663, -inf
    %666 = vmax.xlane.f32.xlu0 %v665
    %v667 = vpop.xlane.xlu0 %666
    %v668 = vsel %vm165, %v664, -inf
    %669 = vmax.xlane.f32.xlu0 %v668
    %v670 = vpop.xlane.xlu0 %669
    %v671 = vsub.f32 %v663, %v667
    %v672 = vsub.f32 %v664, %v670
    %v673 = vmul.f32 %v671, 1.442695
    %v674 = vpow.pop %v673
    %v675 = vmul.f32 %v672, 1.442695
    %v676 = vpow.pop %v675
    %v677 = vsel %vm165, %v674, 0.0
    %678 = vadd.xlane.f32.xlu0 %v677
    %v679 = vpop.xlane.xlu0 %678
    %v680 = vsel %vm165, %v676, 0.0
    %681 = vadd.xlane.f32.xlu0 %v680
    %v682 = vpop.xlane.xlu0 %681
    %v683 = vrcp.pop %v679
    %v684 = vrcp.pop %v682
    %v685 = vmul.f32 %v674, %v683
    %v686 = vmul.f32 %v676, %v684
    %687 = vrot.lane.b32.xlu0 %v119, 56
    %v688 = vpop.permute.xlu0 %687
    %v691 = vsel %vm165, %v685, 0
    %693 = vmatprep.subr.mxu0 0.0
    %694 = vmatpush1.msra.mxu0 %v688
    %695 = vmatprep.subr.mxu0 0.0
    %696 = vmatpush1.msra.mxu0 0.0
    %697 = vmatprep.subr.mxu0 0.0
    %698 = vmatpush1.msra.mxu0 0.0
    %699 = vmatprep.subr.mxu0 0.0
    %700 = vmatpush1.msra.mxu0 0.0
    %701 = vmatprep.subr.mxu0 0.0
    %702 = vmatpush1.msra.mxu0 0.0
    %703 = vmatprep.subr.mxu0 0.0
    %704 = vmatpush1.msra.mxu0 0.0
    %705 = vmatprep.subr.mxu0 0.0
    %706 = vmatpush1.msra.mxu0 0.0
    %707 = vmatprep.subr.mxu0 0.0
    %708 = vmatpush1.msra.mxu0 0.0
    %709 = vmatprep.subr.mxu0 0.0
    %710 = vmatpush1.msra.mxu0 0.0
    %711 = vmatprep.subr.mxu0 0.0
    %712 = vmatpush1.msra.mxu0 0.0
    %713 = vmatprep.subr.mxu0 0.0
    %714 = vmatpush1.msra.mxu0 0.0
    %715 = vmatprep.subr.mxu0 0.0
    %716 = vmatpush1.msra.mxu0 0.0
    %717 = vmatprep.subr.mxu0 0.0
    %718 = vmatpush1.msra.mxu0 0.0
    %719 = vmatprep.subr.mxu0 0.0
    %720 = vmatpush1.msra.mxu0 0.0
    %721 = vmatprep.subr.mxu0 0.0
    %722 = vmatpush1.msra.mxu0 0.0
    %723 = vmatprep.subr.mxu0 0.0
    %724 = vmatpush1.msra.mxu0 0.0
    %725 = vmatprep.subr.mxu0 0.0
    %726 = vmatpush1.msra.mxu0 0.0
    %727 = vmatprep.subr.mxu0 0.0
    %728 = vmatpush1.msra.mxu0 0.0
    %729 = vmatprep.subr.mxu0 0.0
    %730 = vmatpush1.msra.mxu0 0.0
    %731 = vmatprep.subr.mxu0 0.0
    %732 = vmatpush1.msra.mxu0 0.0
    %733 = vmatprep.subr.mxu0 0.0
    %734 = vmatpush1.msra.mxu0 0.0
    %735 = vmatprep.subr.mxu0 0.0
    %736 = vmatpush1.msra.mxu0 0.0
    %737 = vmatprep.subr.mxu0 0.0
    %738 = vmatpush1.msra.mxu0 0.0
    %739 = vmatprep.subr.mxu0 0.0
    %740 = vmatpush1.msra.mxu0 0.0
    %741 = vmatprep.subr.mxu0 0.0
    %742 = vmatpush1.msra.mxu0 0.0
    %743 = vmatprep.subr.mxu0 0.0
    %744 = vmatpush1.msra.mxu0 0.0
    %745 = vmatprep.subr.mxu0 0.0
    %746 = vmatpush1.msra.mxu0 0.0
    %747 = vmatprep.subr.mxu0 0.0
    %748 = vmatpush1.msra.mxu0 0.0
    %749 = vmatprep.subr.mxu0 0.0
    %750 = vmatpush1.msra.mxu0 0.0
    %751 = vmatprep.subr.mxu0 0.0
    %752 = vmatpush1.msra.mxu0 0.0
    %753 = vmatprep.subr.mxu0 0.0
    %754 = vmatpush1.msra.mxu0 0.0
    %755 = vmatprep.subr.mxu0 0.0
    %756 = vmatpush1.msra.mxu0 0.0
    %757 = vmatprep.mubr.f32.mxu0 0.0
    %758 = vmatmul.mubr.f32.gmra.mrb[0].mxu0 %v691
    %v759 = vpop.f32.mrb[0].mxu0
    %v760 = vadd.f32 0.0, %v759
    %v761 = vpop.f32.mrb[0].mxu0
    %762 = vdwg.mxu0
    %763 = vrot.lane.b32.xlu0 %v124, 56
    %v764 = vpop.permute.xlu0 %763
    %v767 = vsel %vm165, %v686, 0
    %769 = vmatprep.subr.mxu0 0.0
    %770 = vmatpush1.msra.mxu0 %v764
    %771 = vmatprep.subr.mxu0 0.0
    %772 = vmatpush1.msra.mxu0 0.0
    %773 = vmatprep.subr.mxu0 0.0
    %774 = vmatpush1.msra.mxu0 0.0
    %775 = vmatprep.subr.mxu0 0.0
    %776 = vmatpush1.msra.mxu0 0.0
    %777 = vmatprep.subr.mxu0 0.0
    %778 = vmatpush1.msra.mxu0 0.0
    %779 = vmatprep.subr.mxu0 0.0
    %780 = vmatpush1.msra.mxu0 0.0
    %781 = vmatprep.subr.mxu0 0.0
    %782 = vmatpush1.msra.mxu0 0.0
    %783 = vmatprep.subr.mxu0 0.0
    %784 = vmatpush1.msra.mxu0 0.0
    %785 = vmatprep.subr.mxu0 0.0
    %786 = vmatpush1.msra.mxu0 0.0
    %787 = vmatprep.subr.mxu0 0.0
    %788 = vmatpush1.msra.mxu0 0.0
    %789 = vmatprep.subr.mxu0 0.0
    %790 = vmatpush1.msra.mxu0 0.0
    %791 = vmatprep.subr.mxu0 0.0
    %792 = vmatpush1.msra.mxu0 0.0
    %793 = vmatprep.subr.mxu0 0.0
    %794 = vmatpush1.msra.mxu0 0.0
    %795 = vmatprep.subr.mxu0 0.0
    %796 = vmatpush1.msra.mxu0 0.0
    %797 = vmatprep.subr.mxu0 0.0
    %798 = vmatpush1.msra.mxu0 0.0
    %799 = vmatprep.subr.mxu0 0.0
    %800 = vmatpush1.msra.mxu0 0.0
    %801 = vmatprep.subr.mxu0 0.0
    %802 = vmatpush1.msra.mxu0 0.0
    %803 = vmatprep.subr.mxu0 0.0
    %804 = vmatpush1.msra.mxu0 0.0
    %805 = vmatprep.subr.mxu0 0.0
    %806 = vmatpush1.msra.mxu0 0.0
    %807 = vmatprep.subr.mxu0 0.0
    %808 = vmatpush1.msra.mxu0 0.0
    %809 = vmatprep.subr.mxu0 0.0
    %810 = vmatpush1.msra.mxu0 0.0
    %811 = vmatprep.subr.mxu0 0.0
    %812 = vmatpush1.msra.mxu0 0.0
    %813 = vmatprep.subr.mxu0 0.0
    %814 = vmatpush1.msra.mxu0 0.0
    %815 = vmatprep.subr.mxu0 0.0
    %816 = vmatpush1.msra.mxu0 0.0
    %817 = vmatprep.subr.mxu0 0.0
    %818 = vmatpush1.msra.mxu0 0.0
    %819 = vmatprep.subr.mxu0 0.0
    %820 = vmatpush1.msra.mxu0 0.0
    %821 = vmatprep.subr.mxu0 0.0
    %822 = vmatpush1.msra.mxu0 0.0
    %823 = vmatprep.subr.mxu0 0.0
    %824 = vmatpush1.msra.mxu0 0.0
    %825 = vmatprep.subr.mxu0 0.0
    %826 = vmatpush1.msra.mxu0 0.0
    %827 = vmatprep.subr.mxu0 0.0
    %828 = vmatpush1.msra.mxu0 0.0
    %829 = vmatprep.subr.mxu0 0.0
    %830 = vmatpush1.msra.mxu0 0.0
    %831 = vmatprep.subr.mxu0 0.0
    %832 = vmatpush1.msra.mxu0 0.0
    %833 = vmatprep.mubr.f32.mxu0 0.0
    %834 = vmatmul.mubr.f32.gmra.mrb[0].mxu0 %v767
    %v835 = vpop.f32.mrb[0].mxu0
    %v836 = vadd.f32 0.0, %v835
    %v837 = vpop.f32.mrb[0].mxu0
    %838 = vdwg.mxu0
    %v840 = vsel %vm165, %v760, 0
    %v843 = vsel %vm165, %v836, 0
    %845 = vmatprep.subr.mxu0 0.0
    %846 = vmatpush1.msra.mxu0 %v159
    %847 = vmatprep.subr.mxu0 0.0
    %848 = vmatpush1.msra.mxu0 0.0
    %849 = vmatprep.subr.mxu0 0.0
    %850 = vmatpush1.msra.mxu0 0.0
    %851 = vmatprep.subr.mxu0 0.0
    %852 = vmatpush1.msra.mxu0 0.0
    %853 = vmatprep.subr.mxu0 0.0
    %854 = vmatpush1.msra.mxu0 0.0
    %855 = vmatprep.subr.mxu0 0.0
    %856 = vmatpush1.msra.mxu0 0.0
    %857 = vmatprep.subr.mxu0 0.0
    %858 = vmatpush1.msra.mxu0 0.0
    %859 = vmatprep.subr.mxu0 0.0
    %860 = vmatpush1.msra.mxu0 0.0
    %861 = vmatprep.subr.mxu0 0.0
    %862 = vmatpush1.msra.mxu0 0.0
    %863 = vmatprep.subr.mxu0 0.0
    %864 = vmatpush1.msra.mxu0 0.0
    %865 = vmatprep.subr.mxu0 0.0
    %866 = vmatpush1.msra.mxu0 0.0
    %867 = vmatprep.subr.mxu0 0.0
    %868 = vmatpush1.msra.mxu0 0.0
    %869 = vmatprep.subr.mxu0 0.0
    %870 = vmatpush1.msra.mxu0 0.0
    %871 = vmatprep.subr.mxu0 0.0
    %872 = vmatpush1.msra.mxu0 0.0
    %873 = vmatprep.subr.mxu0 0.0
    %874 = vmatpush1.msra.mxu0 0.0
    %875 = vmatprep.subr.mxu0 0.0
    %876 = vmatpush1.msra.mxu0 0.0
    %877 = vmatprep.subr.mxu0 0.0
    %878 = vmatpush1.msra.mxu0 0.0
    %879 = vmatprep.subr.mxu0 0.0
    %880 = vmatpush1.msra.mxu0 0.0
    %881 = vmatprep.subr.mxu0 0.0
    %882 = vmatpush1.msra.mxu0 0.0
    %883 = vmatprep.subr.mxu0 0.0
    %884 = vmatpush1.msra.mxu0 0.0
    %885 = vmatprep.subr.mxu0 0.0
    %886 = vmatpush1.msra.mxu0 0.0
    %887 = vmatprep.subr.mxu0 0.0
    %888 = vmatpush1.msra.mxu0 0.0
    %889 = vmatprep.subr.mxu0 0.0
    %890 = vmatpush1.msra.mxu0 0.0
    %891 = vmatprep.subr.mxu0 0.0
    %892 = vmatpush1.msra.mxu0 0.0
    %893 = vmatprep.subr.mxu0 0.0
    %894 = vmatpush1.msra.mxu0 0.0
    %895 = vmatprep.subr.mxu0 0.0
    %896 = vmatpush1.msra.mxu0 0.0
    %897 = vmatprep.subr.mxu0 0.0
    %898 = vmatpush1.msra.mxu0 0.0
    %899 = vmatprep.subr.mxu0 0.0
    %900 = vmatpush1.msra.mxu0 0.0
    %901 = vmatprep.subr.mxu0 0.0
    %902 = vmatpush1.msra.mxu0 0.0
    %903 = vmatprep.subr.mxu0 0.0
    %904 = vmatpush1.msra.mxu0 0.0
    %905 = vmatprep.subr.mxu0 0.0
    %906 = vmatpush1.msra.mxu0 0.0
    %907 = vmatprep.subr.mxu0 0.0
    %908 = vmatpush1.msra.mxu0 0.0
    %909 = vmatprep.mubr.f32.mxu0 0.0
    %910 = vmatmul.mubr.f32.gmra.mrb[0].mxu0 %v840
    %v911 = vpop.f32.mrb[0].mxu0
    %v912 = vadd.f32 0.0, %v911
    %v913 = vpop.f32.mrb[0].mxu0
    %914 = vmatprep.mubr.f32.mxu0 0.0
    %915 = vmatmul.mubr.f32.gmra.mrb[0].mxu0 %v843
    %v916 = vpop.f32.mrb[0].mxu0
    %v917 = vadd.f32 0.0, %v916
    %v918 = vpop.f32.mrb[0].mxu0
    %919 = vdwg.mxu0
    %v921 = vsel %vm165, %v426, 0
    %v924 = vsel %vm165, %v502, 0
    %926 = vmatprep.subr.mxu0 0.0
    %927 = vmatpush1.msra.mxu0 %v158
    %928 = vmatprep.subr.mxu0 0.0
    %929 = vmatpush1.msra.mxu0 0.0
    %930 = vmatprep.subr.mxu0 0.0
    %931 = vmatpush1.msra.mxu0 0.0
    %932 = vmatprep.subr.mxu0 0.0
    %933 = vmatpush1.msra.mxu0 0.0
    %934 = vmatprep.subr.mxu0 0.0
    %935 = vmatpush1.msra.mxu0 0.0
    %936 = vmatprep.subr.mxu0 0.0
    %937 = vmatpush1.msra.mxu0 0.0
    %938 = vmatprep.subr.mxu0 0.0
    %939 = vmatpush1.msra.mxu0 0.0
    %940 = vmatprep.subr.mxu0 0.0
    %941 = vmatpush1.msra.mxu0 0.0
    %942 = vmatprep.subr.mxu0 0.0
    %943 = vmatpush1.msra.mxu0 0.0
    %944 = vmatprep.subr.mxu0 0.0
    %945 = vmatpush1.msra.mxu0 0.0
    %946 = vmatprep.subr.mxu0 0.0
    %947 = vmatpush1.msra.mxu0 0.0
    %948 = vmatprep.subr.mxu0 0.0
    %949 = vmatpush1.msra.mxu0 0.0
    %950 = vmatprep.subr.mxu0 0.0
    %951 = vmatpush1.msra.mxu0 0.0
    %952 = vmatprep.subr.mxu0 0.0
    %953 = vmatpush1.msra.mxu0 0.0
    %954 = vmatprep.subr.mxu0 0.0
    %955 = vmatpush1.msra.mxu0 0.0
    %956 = vmatprep.subr.mxu0 0.0
    %957 = vmatpush1.msra.mxu0 0.0
    %958 = vmatprep.subr.mxu0 0.0
    %959 = vmatpush1.msra.mxu0 0.0
    %960 = vmatprep.subr.mxu0 0.0
    %961 = vmatpush1.msra.mxu0 0.0
    %962 = vmatprep.subr.mxu0 0.0
    %963 = vmatpush1.msra.mxu0 0.0
    %964 = vmatprep.subr.mxu0 0.0
    %965 = vmatpush1.msra.mxu0 0.0
    %966 = vmatprep.subr.mxu0 0.0
    %967 = vmatpush1.msra.mxu0 0.0
    %968 = vmatprep.subr.mxu0 0.0
    %969 = vmatpush1.msra.mxu0 0.0
    %970 = vmatprep.subr.mxu0 0.0
    %971 = vmatpush1.msra.mxu0 0.0
    %972 = vmatprep.subr.mxu0 0.0
    %973 = vmatpush1.msra.mxu0 0.0
    %974 = vmatprep.subr.mxu0 0.0
    %975 = vmatpush1.msra.mxu0 0.0
    %976 = vmatprep.subr.mxu0 0.0
    %977 = vmatpush1.msra.mxu0 0.0
    %978 = vmatprep.subr.mxu0 0.0
    %979 = vmatpush1.msra.mxu0 0.0
    %980 = vmatprep.subr.mxu0 0.0
    %981 = vmatpush1.msra.mxu0 0.0
    %982 = vmatprep.subr.mxu0 0.0
    %983 = vmatpush1.msra.mxu0 0.0
    %984 = vmatprep.subr.mxu0 0.0
    %985 = vmatpush1.msra.mxu0 0.0
    %986 = vmatprep.subr.mxu0 0.0
    %987 = vmatpush1.msra.mxu0 0.0
    %988 = vmatprep.subr.mxu0 0.0
    %989 = vmatpush1.msra.mxu0 0.0
    %990 = vmatprep.mubr.f32.mxu0 0.0
    %991 = vmatmul.mubr.f32.gmra.mrb[0].mxu0 %v921
    %v992 = vpop.f32.mrb[0].mxu0
    %v993 = vadd.f32 %v912, %v992
    %v994 = vpop.f32.mrb[0].mxu0
    %995 = vmatprep.mubr.f32.mxu0 0.0
    %996 = vmatmul.mubr.f32.gmra.mrb[0].mxu0 %v924
    %v997 = vpop.f32.mrb[0].mxu0
    %v998 = vadd.f32 %v917, %v997
    %v999 = vpop.f32.mrb[0].mxu0
    %1000 = vdwg.mxu0
    %1001 = vrot.lane.b32.xlu0 %v119, 112
    %v1002 = vpop.permute.xlu0 %1001
    %1003 = vrot.lane.b32.xlu0 %v119, 80
    %v1004 = vpop.permute.xlu0 %1003
    %v1005 = vsel %vm165, %v1002, 0
    %v1007 = vsel %vm165, %v1004, 0
    %1009 = vmatprep.subr.mxu0 0.0
    %1010 = vmatpush1.xpose.msra.mxu0 %v1007
    %1011 = vmatprep.subr.mxu0 0.0
    %1012 = vmatpush1.xpose.msra.mxu0 0.0
    %1013 = vmatprep.subr.mxu0 0.0
    %1014 = vmatpush1.xpose.msra.mxu0 0.0
    %1015 = vmatprep.subr.mxu0 0.0
    %1016 = vmatpush1.xpose.msra.mxu0 0.0
    %1017 = vmatprep.subr.mxu0 0.0
    %1018 = vmatpush1.xpose.msra.mxu0 0.0
    %1019 = vmatprep.subr.mxu0 0.0
    %1020 = vmatpush1.xpose.msra.mxu0 0.0
    %1021 = vmatprep.subr.mxu0 0.0
    %1022 = vmatpush1.xpose.msra.mxu0 0.0
    %1023 = vmatprep.subr.mxu0 0.0
    %1024 = vmatpush1.xpose.msra.mxu0 0.0
    %1025 = vmatprep.subr.mxu0 0.0
    %1026 = vmatpush1.xpose.msra.mxu0 0.0
    %1027 = vmatprep.subr.mxu0 0.0
    %1028 = vmatpush1.xpose.msra.mxu0 0.0
    %1029 = vmatprep.subr.mxu0 0.0
    %1030 = vmatpush1.xpose.msra.mxu0 0.0
    %1031 = vmatprep.subr.mxu0 0.0
    %1032 = vmatpush1.xpose.msra.mxu0 0.0
    %1033 = vmatprep.subr.mxu0 0.0
    %1034 = vmatpush1.xpose.msra.mxu0 0.0
    %1035 = vmatprep.subr.mxu0 0.0
    %1036 = vmatpush1.xpose.msra.mxu0 0.0
    %1037 = vmatprep.subr.mxu0 0.0
    %1038 = vmatpush1.xpose.msra.mxu0 0.0
    %1039 = vmatprep.subr.mxu0 0.0
    %1040 = vmatpush1.xpose.msra.mxu0 0.0
    %1041 = vmatprep.subr.mxu0 0.0
    %1042 = vmatpush1.xpose.msra.mxu0 0.0
    %1043 = vmatprep.subr.mxu0 0.0
    %1044 = vmatpush1.xpose.msra.mxu0 0.0
    %1045 = vmatprep.subr.mxu0 0.0
    %1046 = vmatpush1.xpose.msra.mxu0 0.0
    %1047 = vmatprep.subr.mxu0 0.0
    %1048 = vmatpush1.xpose.msra.mxu0 0.0
    %1049 = vmatprep.subr.mxu0 0.0
    %1050 = vmatpush1.xpose.msra.mxu0 0.0
    %1051 = vmatprep.subr.mxu0 0.0
    %1052 = vmatpush1.xpose.msra.mxu0 0.0
    %1053 = vmatprep.subr.mxu0 0.0
    %1054 = vmatpush1.xpose.msra.mxu0 0.0
    %1055 = vmatprep.subr.mxu0 0.0
    %1056 = vmatpush1.xpose.msra.mxu0 0.0
    %1057 = vmatprep.subr.mxu0 0.0
    %1058 = vmatpush1.xpose.msra.mxu0 0.0
    %1059 = vmatprep.subr.mxu0 0.0
    %1060 = vmatpush1.xpose.msra.mxu0 0.0
    %1061 = vmatprep.subr.mxu0 0.0
    %1062 = vmatpush1.xpose.msra.mxu0 0.0
    %1063 = vmatprep.subr.mxu0 0.0
    %1064 = vmatpush1.xpose.msra.mxu0 0.0
    %1065 = vmatprep.subr.mxu0 0.0
    %1066 = vmatpush1.xpose.msra.mxu0 0.0
    %1067 = vmatprep.subr.mxu0 0.0
    %1068 = vmatpush1.xpose.msra.mxu0 0.0
    %1069 = vmatprep.subr.mxu0 0.0
    %1070 = vmatpush1.xpose.msra.mxu0 0.0
    %1071 = vmatprep.subr.mxu0 0.0
    %1072 = vmatpush1.xpose.msra.mxu0 0.0
    %1073 = vmatprep.mubr.f32.mxu0 0.0
    %1074 = vmatmul.mubr.f32.gmra.mrb[0].mxu0 %v1005
    %v1075 = vpop.f32.mrb[0].mxu0
    %v1076 = vadd.f32 0.0, %v1075
    %v1077 = vpop.f32.mrb[0].mxu0
    %1078 = vdwg.mxu0
    %1079 = vrot.lane.b32.xlu0 %v124, 112
    %v1080 = vpop.permute.xlu0 %1079
    %1081 = vrot.lane.b32.xlu0 %v124, 80
    %v1082 = vpop.permute.xlu0 %1081
    %v1083 = vsel %vm165, %v1080, 0
    %v1085 = vsel %vm165, %v1082, 0
    %1087 = vmatprep.subr.mxu0 0.0
    %1088 = vmatpush1.xpose.msra.mxu0 %v1085
    %1089 = vmatprep.subr.mxu0 0.0
    %1090 = vmatpush1.xpose.msra.mxu0 0.0
    %1091 = vmatprep.subr.mxu0 0.0
    %1092 = vmatpush1.xpose.msra.mxu0 0.0
    %1093 = vmatprep.subr.mxu0 0.0
    %1094 = vmatpush1.xpose.msra.mxu0 0.0
    %1095 = vmatprep.subr.mxu0 0.0
    %1096 = vmatpush1.xpose.msra.mxu0 0.0
    %1097 = vmatprep.subr.mxu0 0.0
    %1098 = vmatpush1.xpose.msra.mxu0 0.0
    %1099 = vmatprep.subr.mxu0 0.0
    %1100 = vmatpush1.xpose.msra.mxu0 0.0
    %1101 = vmatprep.subr.mxu0 0.0
    %1102 = vmatpush1.xpose.msra.mxu0 0.0
    %1103 = vmatprep.subr.mxu0 0.0
    %1104 = vmatpush1.xpose.msra.mxu0 0.0
    %1105 = vmatprep.subr.mxu0 0.0
    %1106 = vmatpush1.xpose.msra.mxu0 0.0
    %1107 = vmatprep.subr.mxu0 0.0
    %1108 = vmatpush1.xpose.msra.mxu0 0.0
    %1109 = vmatprep.subr.mxu0 0.0
    %1110 = vmatpush1.xpose.msra.mxu0 0.0
    %1111 = vmatprep.subr.mxu0 0.0
    %1112 = vmatpush1.xpose.msra.mxu0 0.0
    %1113 = vmatprep.subr.mxu0 0.0
    %1114 = vmatpush1.xpose.msra.mxu0 0.0
    %1115 = vmatprep.subr.mxu0 0.0
    %1116 = vmatpush1.xpose.msra.mxu0 0.0
    %1117 = vmatprep.subr.mxu0 0.0
    %1118 = vmatpush1.xpose.msra.mxu0 0.0
    %1119 = vmatprep.subr.mxu0 0.0
    %1120 = vmatpush1.xpose.msra.mxu0 0.0
    %1121 = vmatprep.subr.mxu0 0.0
    %1122 = vmatpush1.xpose.msra.mxu0 0.0
    %1123 = vmatprep.subr.mxu0 0.0
    %1124 = vmatpush1.xpose.msra.mxu0 0.0
    %1125 = vmatprep.subr.mxu0 0.0
    %1126 = vmatpush1.xpose.msra.mxu0 0.0
    %1127 = vmatprep.subr.mxu0 0.0
    %1128 = vmatpush1.xpose.msra.mxu0 0.0
    %1129 = vmatprep.subr.mxu0 0.0
    %1130 = vmatpush1.xpose.msra.mxu0 0.0
    %1131 = vmatprep.subr.mxu0 0.0
    %1132 = vmatpush1.xpose.msra.mxu0 0.0
    %1133 = vmatprep.subr.mxu0 0.0
    %1134 = vmatpush1.xpose.msra.mxu0 0.0
    %1135 = vmatprep.subr.mxu0 0.0
    %1136 = vmatpush1.xpose.msra.mxu0 0.0
    %1137 = vmatprep.subr.mxu0 0.0
    %1138 = vmatpush1.xpose.msra.mxu0 0.0
    %1139 = vmatprep.subr.mxu0 0.0
    %1140 = vmatpush1.xpose.msra.mxu0 0.0
    %1141 = vmatprep.subr.mxu0 0.0
    %1142 = vmatpush1.xpose.msra.mxu0 0.0
    %1143 = vmatprep.subr.mxu0 0.0
    %1144 = vmatpush1.xpose.msra.mxu0 0.0
    %1145 = vmatprep.subr.mxu0 0.0
    %1146 = vmatpush1.xpose.msra.mxu0 0.0
    %1147 = vmatprep.subr.mxu0 0.0
    %1148 = vmatpush1.xpose.msra.mxu0 0.0
    %1149 = vmatprep.subr.mxu0 0.0
    %1150 = vmatpush1.xpose.msra.mxu0 0.0
    %1151 = vmatprep.mubr.f32.mxu0 0.0
    %1152 = vmatmul.mubr.f32.gmra.mrb[0].mxu0 %v1083
    %v1153 = vpop.f32.mrb[0].mxu0
    %v1154 = vadd.f32 0.0, %v1153
    %v1155 = vpop.f32.mrb[0].mxu0
    %1156 = vdwg.mxu0
    %v1157 = vmul.f32 %v1076, 0.35355338
    %v1158 = vmul.f32 %v1154, 0.35355338
    %v1159 = vadd.f32 %v1157, %v322
    %v1160 = vadd.f32 %v1158, %v326
    %v1161 = vsel %vm165, %v1159, -inf
    %1162 = vmax.xlane.f32.xlu0 %v1161
    %v1163 = vpop.xlane.xlu0 %1162
    %v1164 = vsel %vm165, %v1160, -inf
    %1165 = vmax.xlane.f32.xlu0 %v1164
    %v1166 = vpop.xlane.xlu0 %1165
    %v1167 = vsub.f32 %v1159, %v1163
    %v1168 = vsub.f32 %v1160, %v1166
    %v1169 = vmul.f32 %v1167, 1.442695
    %v1170 = vpow.pop %v1169
    %v1171 = vmul.f32 %v1168, 1.442695
    %v1172 = vpow.pop %v1171
    %v1173 = vsel %vm165, %v1170, 0.0
    %1174 = vadd.xlane.f32.xlu0 %v1173
    %v1175 = vpop.xlane.xlu0 %1174
    %v1176 = vsel %vm165, %v1172, 0.0
    %1177 = vadd.xlane.f32.xlu0 %v1176
    %v1178 = vpop.xlane.xlu0 %1177
    %v1179 = vrcp.pop %v1175
    %v1180 = vrcp.pop %v1178
    %v1181 = vmul.f32 %v1170, %v1179
    %v1182 = vmul.f32 %v1172, %v1180
    %1183 = vrot.lane.b32.xlu0 %v119, 48
    %v1184 = vpop.permute.xlu0 %1183
    %v1187 = vsel %vm165, %v1181, 0
    %1189 = vmatprep.subr.mxu0 0.0
    %1190 = vmatpush1.msra.mxu0 %v1184
    %1191 = vmatprep.subr.mxu0 0.0
    %1192 = vmatpush1.msra.mxu0 0.0
    %1193 = vmatprep.subr.mxu0 0.0
    %1194 = vmatpush1.msra.mxu0 0.0
    %1195 = vmatprep.subr.mxu0 0.0
    %1196 = vmatpush1.msra.mxu0 0.0
    %1197 = vmatprep.subr.mxu0 0.0
    %1198 = vmatpush1.msra.mxu0 0.0
    %1199 = vmatprep.subr.mxu0 0.0
    %1200 = vmatpush1.msra.mxu0 0.0
    %1201 = vmatprep.subr.mxu0 0.0
    %1202 = vmatpush1.msra.mxu0 0.0
    %1203 = vmatprep.subr.mxu0 0.0
    %1204 = vmatpush1.msra.mxu0 0.0
    %1205 = vmatprep.subr.mxu0 0.0
    %1206 = vmatpush1.msra.mxu0 0.0
    %1207 = vmatprep.subr.mxu0 0.0
    %1208 = vmatpush1.msra.mxu0 0.0
    %1209 = vmatprep.subr.mxu0 0.0
    %1210 = vmatpush1.msra.mxu0 0.0
    %1211 = vmatprep.subr.mxu0 0.0
    %1212 = vmatpush1.msra.mxu0 0.0
    %1213 = vmatprep.subr.mxu0 0.0
    %1214 = vmatpush1.msra.mxu0 0.0
    %1215 = vmatprep.subr.mxu0 0.0
    %1216 = vmatpush1.msra.mxu0 0.0
    %1217 = vmatprep.subr.mxu0 0.0
    %1218 = vmatpush1.msra.mxu0 0.0
    %1219 = vmatprep.subr.mxu0 0.0
    %1220 = vmatpush1.msra.mxu0 0.0
    %1221 = vmatprep.subr.mxu0 0.0
    %1222 = vmatpush1.msra.mxu0 0.0
    %1223 = vmatprep.subr.mxu0 0.0
    %1224 = vmatpush1.msra.mxu0 0.0
    %1225 = vmatprep.subr.mxu0 0.0
    %1226 = vmatpush1.msra.mxu0 0.0
    %1227 = vmatprep.subr.mxu0 0.0
    %1228 = vmatpush1.msra.mxu0 0.0
    %1229 = vmatprep.subr.mxu0 0.0
    %1230 = vmatpush1.msra.mxu0 0.0
    %1231 = vmatprep.subr.mxu0 0.0
    %1232 = vmatpush1.msra.mxu0 0.0
    %1233 = vmatprep.subr.mxu0 0.0
    %1234 = vmatpush1.msra.mxu0 0.0
    %1235 = vmatprep.subr.mxu0 0.0
    %1236 = vmatpush1.msra.mxu0 0.0
    %1237 = vmatprep.subr.mxu0 0.0
    %1238 = vmatpush1.msra.mxu0 0.0
    %1239 = vmatprep.subr.mxu0 0.0
    %1240 = vmatpush1.msra.mxu0 0.0
    %1241 = vmatprep.subr.mxu0 0.0
    %1242 = vmatpush1.msra.mxu0 0.0
    %1243 = vmatprep.subr.mxu0 0.0
    %1244 = vmatpush1.msra.mxu0 0.0
    %1245 = vmatprep.subr.mxu0 0.0
    %1246 = vmatpush1.msra.mxu0 0.0
    %1247 = vmatprep.subr.mxu0 0.0
    %1248 = vmatpush1.msra.mxu0 0.0
    %1249 = vmatprep.subr.mxu0 0.0
    %1250 = vmatpush1.msra.mxu0 0.0
    %1251 = vmatprep.subr.mxu0 0.0
    %1252 = vmatpush1.msra.mxu0 0.0
    %1253 = vmatprep.mubr.f32.mxu0 0.0
    %1254 = vmatmul.mubr.f32.gmra.mrb[0].mxu0 %v1187
    %v1255 = vpop.f32.mrb[0].mxu0
    %v1256 = vadd.f32 0.0, %v1255
    %v1257 = vpop.f32.mrb[0].mxu0
    %1258 = vdwg.mxu0
    %1259 = vrot.lane.b32.xlu0 %v124, 48
    %v1260 = vpop.permute.xlu0 %1259
    %v1263 = vsel %vm165, %v1182, 0
    %1265 = vmatprep.subr.mxu0 0.0
    %1266 = vmatpush1.msra.mxu0 %v1260
    %1267 = vmatprep.subr.mxu0 0.0
    %1268 = vmatpush1.msra.mxu0 0.0
    %1269 = vmatprep.subr.mxu0 0.0
    %1270 = vmatpush1.msra.mxu0 0.0
    %1271 = vmatprep.subr.mxu0 0.0
    %1272 = vmatpush1.msra.mxu0 0.0
    %1273 = vmatprep.subr.mxu0 0.0
    %1274 = vmatpush1.msra.mxu0 0.0
    %1275 = vmatprep.subr.mxu0 0.0
    %1276 = vmatpush1.msra.mxu0 0.0
    %1277 = vmatprep.subr.mxu0 0.0
    %1278 = vmatpush1.msra.mxu0 0.0
    %1279 = vmatprep.subr.mxu0 0.0
    %1280 = vmatpush1.msra.mxu0 0.0
    %1281 = vmatprep.subr.mxu0 0.0
    %1282 = vmatpush1.msra.mxu0 0.0
    %1283 = vmatprep.subr.mxu0 0.0
    %1284 = vmatpush1.msra.mxu0 0.0
    %1285 = vmatprep.subr.mxu0 0.0
    %1286 = vmatpush1.msra.mxu0 0.0
    %1287 = vmatprep.subr.mxu0 0.0
    %1288 = vmatpush1.msra.mxu0 0.0
    %1289 = vmatprep.subr.mxu0 0.0
    %1290 = vmatpush1.msra.mxu0 0.0
    %1291 = vmatprep.subr.mxu0 0.0
    %1292 = vmatpush1.msra.mxu0 0.0
    %1293 = vmatprep.subr.mxu0 0.0
    %1294 = vmatpush1.msra.mxu0 0.0
    %1295 = vmatprep.subr.mxu0 0.0
    %1296 = vmatpush1.msra.mxu0 0.0
    %1297 = vmatprep.subr.mxu0 0.0
    %1298 = vmatpush1.msra.mxu0 0.0
    %1299 = vmatprep.subr.mxu0 0.0
    %1300 = vmatpush1.msra.mxu0 0.0
    %1301 = vmatprep.subr.mxu0 0.0
    %1302 = vmatpush1.msra.mxu0 0.0
    %1303 = vmatprep.subr.mxu0 0.0
    %1304 = vmatpush1.msra.mxu0 0.0
    %1305 = vmatprep.subr.mxu0 0.0
    %1306 = vmatpush1.msra.mxu0 0.0
    %1307 = vmatprep.subr.mxu0 0.0
    %1308 = vmatpush1.msra.mxu0 0.0
    %1309 = vmatprep.subr.mxu0 0.0
    %1310 = vmatpush1.msra.mxu0 0.0
    %1311 = vmatprep.subr.mxu0 0.0
    %1312 = vmatpush1.msra.mxu0 0.0
    %1313 = vmatprep.subr.mxu0 0.0
    %1314 = vmatpush1.msra.mxu0 0.0
    %1315 = vmatprep.subr.mxu0 0.0
    %1316 = vmatpush1.msra.mxu0 0.0
    %1317 = vmatprep.subr.mxu0 0.0
    %1318 = vmatpush1.msra.mxu0 0.0
    %1319 = vmatprep.subr.mxu0 0.0
    %1320 = vmatpush1.msra.mxu0 0.0
    %1321 = vmatprep.subr.mxu0 0.0
    %1322 = vmatpush1.msra.mxu0 0.0
    %1323 = vmatprep.subr.mxu0 0.0
    %1324 = vmatpush1.msra.mxu0 0.0
    %1325 = vmatprep.subr.mxu0 0.0
    %1326 = vmatpush1.msra.mxu0 0.0
    %1327 = vmatprep.subr.mxu0 0.0
    %1328 = vmatpush1.msra.mxu0 0.0
    %1329 = vmatprep.mubr.f32.mxu0 0.0
    %1330 = vmatmul.mubr.f32.gmra.mrb[0].mxu0 %v1263
    %v1331 = vpop.f32.mrb[0].mxu0
    %v1332 = vadd.f32 0.0, %v1331
    %v1333 = vpop.f32.mrb[0].mxu0
    %1334 = vdwg.mxu0
    %v1336 = vsel %vm165, %v1256, 0
    %v1339 = vsel %vm165, %v1332, 0
    %1341 = vmatprep.subr.mxu0 0.0
    %1342 = vmatpush1.msra.mxu0 %v160
    %1343 = vmatprep.subr.mxu0 0.0
    %1344 = vmatpush1.msra.mxu0 0.0
    %1345 = vmatprep.subr.mxu0 0.0
    %1346 = vmatpush1.msra.mxu0 0.0
    %1347 = vmatprep.subr.mxu0 0.0
    %1348 = vmatpush1.msra.mxu0 0.0
    %1349 = vmatprep.subr.mxu0 0.0
    %1350 = vmatpush1.msra.mxu0 0.0
    %1351 = vmatprep.subr.mxu0 0.0
    %1352 = vmatpush1.msra.mxu0 0.0
    %1353 = vmatprep.subr.mxu0 0.0
    %1354 = vmatpush1.msra.mxu0 0.0
    %1355 = vmatprep.subr.mxu0 0.0
    %1356 = vmatpush1.msra.mxu0 0.0
    %1357 = vmatprep.subr.mxu0 0.0
    %1358 = vmatpush1.msra.mxu0 0.0
    %1359 = vmatprep.subr.mxu0 0.0
    %1360 = vmatpush1.msra.mxu0 0.0
    %1361 = vmatprep.subr.mxu0 0.0
    %1362 = vmatpush1.msra.mxu0 0.0
    %1363 = vmatprep.subr.mxu0 0.0
    %1364 = vmatpush1.msra.mxu0 0.0
    %1365 = vmatprep.subr.mxu0 0.0
    %1366 = vmatpush1.msra.mxu0 0.0
    %1367 = vmatprep.subr.mxu0 0.0
    %1368 = vmatpush1.msra.mxu0 0.0
    %1369 = vmatprep.subr.mxu0 0.0
    %1370 = vmatpush1.msra.mxu0 0.0
    %1371 = vmatprep.subr.mxu0 0.0
    %1372 = vmatpush1.msra.mxu0 0.0
    %1373 = vmatprep.subr.mxu0 0.0
    %1374 = vmatpush1.msra.mxu0 0.0
    %1375 = vmatprep.subr.mxu0 0.0
    %1376 = vmatpush1.msra.mxu0 0.0
    %1377 = vmatprep.subr.mxu0 0.0
    %1378 = vmatpush1.msra.mxu0 0.0
    %1379 = vmatprep.subr.mxu0 0.0
    %1380 = vmatpush1.msra.mxu0 0.0
    %1381 = vmatprep.subr.mxu0 0.0
    %1382 = vmatpush1.msra.mxu0 0.0
    %1383 = vmatprep.subr.mxu0 0.0
    %1384 = vmatpush1.msra.mxu0 0.0
    %1385 = vmatprep.subr.mxu0 0.0
    %1386 = vmatpush1.msra.mxu0 0.0
    %1387 = vmatprep.subr.mxu0 0.0
    %1388 = vmatpush1.msra.mxu0 0.0
    %1389 = vmatprep.subr.mxu0 0.0
    %1390 = vmatpush1.msra.mxu0 0.0
    %1391 = vmatprep.subr.mxu0 0.0
    %1392 = vmatpush1.msra.mxu0 0.0
    %1393 = vmatprep.subr.mxu0 0.0
    %1394 = vmatpush1.msra.mxu0 0.0
    %1395 = vmatprep.subr.mxu0 0.0
    %1396 = vmatpush1.msra.mxu0 0.0
    %1397 = vmatprep.subr.mxu0 0.0
    %1398 = vmatpush1.msra.mxu0 0.0
    %1399 = vmatprep.subr.mxu0 0.0
    %1400 = vmatpush1.msra.mxu0 0.0
    %1401 = vmatprep.subr.mxu0 0.0
    %1402 = vmatpush1.msra.mxu0 0.0
    %1403 = vmatprep.subr.mxu0 0.0
    %1404 = vmatpush1.msra.mxu0 0.0
    %1405 = vmatprep.mubr.f32.mxu0 0.0
    %1406 = vmatmul.mubr.f32.gmra.mrb[0].mxu0 %v1336
    %v1407 = vpop.f32.mrb[0].mxu0
    %v1408 = vadd.f32 0.0, %v1407
    %v1409 = vpop.f32.mrb[0].mxu0
    %1410 = vmatprep.mubr.f32.mxu0 0.0
    %1411 = vmatmul.mubr.f32.gmra.mrb[0].mxu0 %v1339
    %v1412 = vpop.f32.mrb[0].mxu0
    %v1413 = vadd.f32 0.0, %v1412
    %v1414 = vpop.f32.mrb[0].mxu0
    %1415 = vdwg.mxu0
    %v1416 = vadd.f32 %v993, %v1408
    %v1417 = vadd.f32 %v998, %v1413
    %1418 = vrot.lane.b32.xlu0 %v119, 104
    %v1419 = vpop.permute.xlu0 %1418
    %1420 = vrot.lane.b32.xlu0 %v119, 72
    %v1421 = vpop.permute.xlu0 %1420
    %v1422 = vsel %vm165, %v1419, 0
    %v1424 = vsel %vm165, %v1421, 0
    %1426 = vmatprep.subr.mxu0 0.0
    %1427 = vmatpush1.xpose.msra.mxu0 %v1424
    %1428 = vmatprep.subr.mxu0 0.0
    %1429 = vmatpush1.xpose.msra.mxu0 0.0
    %1430 = vmatprep.subr.mxu0 0.0
    %1431 = vmatpush1.xpose.msra.mxu0 0.0
    %1432 = vmatprep.subr.mxu0 0.0
    %1433 = vmatpush1.xpose.msra.mxu0 0.0
    %1434 = vmatprep.subr.mxu0 0.0
    %1435 = vmatpush1.xpose.msra.mxu0 0.0
    %1436 = vmatprep.subr.mxu0 0.0
    %1437 = vmatpush1.xpose.msra.mxu0 0.0
    %1438 = vmatprep.subr.mxu0 0.0
    %1439 = vmatpush1.xpose.msra.mxu0 0.0
    %1440 = vmatprep.subr.mxu0 0.0
    %1441 = vmatpush1.xpose.msra.mxu0 0.0
    %1442 = vmatprep.subr.mxu0 0.0
    %1443 = vmatpush1.xpose.msra.mxu0 0.0
    %1444 = vmatprep.subr.mxu0 0.0
    %1445 = vmatpush1.xpose.msra.mxu0 0.0
    %1446 = vmatprep.subr.mxu0 0.0
    %1447 = vmatpush1.xpose.msra.mxu0 0.0
    %1448 = vmatprep.subr.mxu0 0.0
    %1449 = vmatpush1.xpose.msra.mxu0 0.0
    %1450 = vmatprep.subr.mxu0 0.0
    %1451 = vmatpush1.xpose.msra.mxu0 0.0
    %1452 = vmatprep.subr.mxu0 0.0
    %1453 = vmatpush1.xpose.msra.mxu0 0.0
    %1454 = vmatprep.subr.mxu0 0.0
    %1455 = vmatpush1.xpose.msra.mxu0 0.0
    %1456 = vmatprep.subr.mxu0 0.0
    %1457 = vmatpush1.xpose.msra.mxu0 0.0
    %1458 = vmatprep.subr.mxu0 0.0
    %1459 = vmatpush1.xpose.msra.mxu0 0.0
    %1460 = vmatprep.subr.mxu0 0.0
    %1461 = vmatpush1.xpose.msra.mxu0 0.0
    %1462 = vmatprep.subr.mxu0 0.0
    %1463 = vmatpush1.xpose.msra.mxu0 0.0
    %1464 = vmatprep.subr.mxu0 0.0
    %1465 = vmatpush1.xpose.msra.mxu0 0.0
    %1466 = vmatprep.subr.mxu0 0.0
    %1467 = vmatpush1.xpose.msra.mxu0 0.0
    %1468 = vmatprep.subr.mxu0 0.0
    %1469 = vmatpush1.xpose.msra.mxu0 0.0
    %1470 = vmatprep.subr.mxu0 0.0
    %1471 = vmatpush1.xpose.msra.mxu0 0.0
    %1472 = vmatprep.subr.mxu0 0.0
    %1473 = vmatpush1.xpose.msra.mxu0 0.0
    %1474 = vmatprep.subr.mxu0 0.0
    %1475 = vmatpush1.xpose.msra.mxu0 0.0
    %1476 = vmatprep.subr.mxu0 0.0
    %1477 = vmatpush1.xpose.msra.mxu0 0.0
    %1478 = vmatprep.subr.mxu0 0.0
    %1479 = vmatpush1.xpose.msra.mxu0 0.0
    %1480 = vmatprep.subr.mxu0 0.0
    %1481 = vmatpush1.xpose.msra.mxu0 0.0
    %1482 = vmatprep.subr.mxu0 0.0
    %1483 = vmatpush1.xpose.msra.mxu0 0.0
    %1484 = vmatprep.subr.mxu0 0.0
    %1485 = vmatpush1.xpose.msra.mxu0 0.0
    %1486 = vmatprep.subr.mxu0 0.0
    %1487 = vmatpush1.xpose.msra.mxu0 0.0
    %1488 = vmatprep.subr.mxu0 0.0
    %1489 = vmatpush1.xpose.msra.mxu0 0.0
    %1490 = vmatprep.mubr.f32.mxu0 0.0
    %1491 = vmatmul.mubr.f32.gmra.mrb[0].mxu0 %v1422
    %v1492 = vpop.f32.mrb[0].mxu0
    %v1493 = vadd.f32 0.0, %v1492
    %v1494 = vpop.f32.mrb[0].mxu0
    %1495 = vdwg.mxu0
    %1496 = vrot.lane.b32.xlu0 %v124, 104
    %v1497 = vpop.permute.xlu0 %1496
    %1498 = vrot.lane.b32.xlu0 %v124, 72
    %v1499 = vpop.permute.xlu0 %1498
    %v1500 = vsel %vm165, %v1497, 0
    %v1502 = vsel %vm165, %v1499, 0
    %1504 = vmatprep.subr.mxu0 0.0
    %1505 = vmatpush1.xpose.msra.mxu0 %v1502
    %1506 = vmatprep.subr.mxu0 0.0
    %1507 = vmatpush1.xpose.msra.mxu0 0.0
    %1508 = vmatprep.subr.mxu0 0.0
    %1509 = vmatpush1.xpose.msra.mxu0 0.0
    %1510 = vmatprep.subr.mxu0 0.0
    %1511 = vmatpush1.xpose.msra.mxu0 0.0
    %1512 = vmatprep.subr.mxu0 0.0
    %1513 = vmatpush1.xpose.msra.mxu0 0.0
    %1514 = vmatprep.subr.mxu0 0.0
    %1515 = vmatpush1.xpose.msra.mxu0 0.0
    %1516 = vmatprep.subr.mxu0 0.0
    %1517 = vmatpush1.xpose.msra.mxu0 0.0
    %1518 = vmatprep.subr.mxu0 0.0
    %1519 = vmatpush1.xpose.msra.mxu0 0.0
    %1520 = vmatprep.subr.mxu0 0.0
    %1521 = vmatpush1.xpose.msra.mxu0 0.0
    %1522 = vmatprep.subr.mxu0 0.0
    %1523 = vmatpush1.xpose.msra.mxu0 0.0
    %1524 = vmatprep.subr.mxu0 0.0
    %1525 = vmatpush1.xpose.msra.mxu0 0.0
    %1526 = vmatprep.subr.mxu0 0.0
    %1527 = vmatpush1.xpose.msra.mxu0 0.0
    %1528 = vmatprep.subr.mxu0 0.0
    %1529 = vmatpush1.xpose.msra.mxu0 0.0
    %1530 = vmatprep.subr.mxu0 0.0
    %1531 = vmatpush1.xpose.msra.mxu0 0.0
    %1532 = vmatprep.subr.mxu0 0.0
    %1533 = vmatpush1.xpose.msra.mxu0 0.0
    %1534 = vmatprep.subr.mxu0 0.0
    %1535 = vmatpush1.xpose.msra.mxu0 0.0
    %1536 = vmatprep.subr.mxu0 0.0
    %1537 = vmatpush1.xpose.msra.mxu0 0.0
    %1538 = vmatprep.subr.mxu0 0.0
    %1539 = vmatpush1.xpose.msra.mxu0 0.0
    %1540 = vmatprep.subr.mxu0 0.0
    %1541 = vmatpush1.xpose.msra.mxu0 0.0
    %1542 = vmatprep.subr.mxu0 0.0
    %1543 = vmatpush1.xpose.msra.mxu0 0.0
    %1544 = vmatprep.subr.mxu0 0.0
    %1545 = vmatpush1.xpose.msra.mxu0 0.0
    %1546 = vmatprep.subr.mxu0 0.0
    %1547 = vmatpush1.xpose.msra.mxu0 0.0
    %1548 = vmatprep.subr.mxu0 0.0
    %1549 = vmatpush1.xpose.msra.mxu0 0.0
    %1550 = vmatprep.subr.mxu0 0.0
    %1551 = vmatpush1.xpose.msra.mxu0 0.0
    %1552 = vmatprep.subr.mxu0 0.0
    %1553 = vmatpush1.xpose.msra.mxu0 0.0
    %1554 = vmatprep.subr.mxu0 0.0
    %1555 = vmatpush1.xpose.msra.mxu0 0.0
    %1556 = vmatprep.subr.mxu0 0.0
    %1557 = vmatpush1.xpose.msra.mxu0 0.0
    %1558 = vmatprep.subr.mxu0 0.0
    %1559 = vmatpush1.xpose.msra.mxu0 0.0
    %1560 = vmatprep.subr.mxu0 0.0
    %1561 = vmatpush1.xpose.msra.mxu0 0.0
    %1562 = vmatprep.subr.mxu0 0.0
    %1563 = vmatpush1.xpose.msra.mxu0 0.0
    %1564 = vmatprep.subr.mxu0 0.0
    %1565 = vmatpush1.xpose.msra.mxu0 0.0
    %1566 = vmatprep.subr.mxu0 0.0
    %1567 = vmatpush1.xpose.msra.mxu0 0.0
    %1568 = vmatprep.mubr.f32.mxu0 0.0
    %1569 = vmatmul.mubr.f32.gmra.mrb[0].mxu0 %v1500
    %v1570 = vpop.f32.mrb[0].mxu0
    %v1571 = vadd.f32 0.0, %v1570
    %v1572 = vpop.f32.mrb[0].mxu0
    %1573 = vdwg.mxu0
    %v1574 = vmul.f32 %v1493, 0.35355338
    %v1575 = vmul.f32 %v1571, 0.35355338
    %v1576 = vadd.f32 %v1574, %v322
    %v1577 = vadd.f32 %v1575, %v326
    %v1578 = vsel %vm165, %v1576, -inf
    %1579 = vmax.xlane.f32.xlu0 %v1578
    %v1580 = vpop.xlane.xlu0 %1579
    %v1581 = vsel %vm165, %v1577, -inf
    %1582 = vmax.xlane.f32.xlu0 %v1581
    %v1583 = vpop.xlane.xlu0 %1582
    %v1584 = vsub.f32 %v1576, %v1580
    %v1585 = vsub.f32 %v1577, %v1583
    %v1586 = vmul.f32 %v1584, 1.442695
    %v1587 = vpow.pop %v1586
    %v1588 = vmul.f32 %v1585, 1.442695
    %v1589 = vpow.pop %v1588
    %v1590 = vsel %vm165, %v1587, 0.0
    %1591 = vadd.xlane.f32.xlu0 %v1590
    %v1592 = vpop.xlane.xlu0 %1591
    %v1593 = vsel %vm165, %v1589, 0.0
    %1594 = vadd.xlane.f32.xlu0 %v1593
    %v1595 = vpop.xlane.xlu0 %1594
    %v1596 = vrcp.pop %v1592
    %v1597 = vrcp.pop %v1595
    %v1598 = vmul.f32 %v1587, %v1596
    %v1599 = vmul.f32 %v1589, %v1597
    %1600 = vrot.lane.b32.xlu0 %v119, 40
    %v1601 = vpop.permute.xlu0 %1600
    %v1604 = vsel %vm165, %v1598, 0
    %1606 = vmatprep.subr.mxu0 0.0
    %1607 = vmatpush1.msra.mxu0 %v1601
    %1608 = vmatprep.subr.mxu0 0.0
    %1609 = vmatpush1.msra.mxu0 0.0
    %1610 = vmatprep.subr.mxu0 0.0
    %1611 = vmatpush1.msra.mxu0 0.0
    %1612 = vmatprep.subr.mxu0 0.0
    %1613 = vmatpush1.msra.mxu0 0.0
    %1614 = vmatprep.subr.mxu0 0.0
    %1615 = vmatpush1.msra.mxu0 0.0
    %1616 = vmatprep.subr.mxu0 0.0
    %1617 = vmatpush1.msra.mxu0 0.0
    %1618 = vmatprep.subr.mxu0 0.0
    %1619 = vmatpush1.msra.mxu0 0.0
    %1620 = vmatprep.subr.mxu0 0.0
    %1621 = vmatpush1.msra.mxu0 0.0
    %1622 = vmatprep.subr.mxu0 0.0
    %1623 = vmatpush1.msra.mxu0 0.0
    %1624 = vmatprep.subr.mxu0 0.0
    %1625 = vmatpush1.msra.mxu0 0.0
    %1626 = vmatprep.subr.mxu0 0.0
    %1627 = vmatpush1.msra.mxu0 0.0
    %1628 = vmatprep.subr.mxu0 0.0
    %1629 = vmatpush1.msra.mxu0 0.0
    %1630 = vmatprep.subr.mxu0 0.0
    %1631 = vmatpush1.msra.mxu0 0.0
    %1632 = vmatprep.subr.mxu0 0.0
    %1633 = vmatpush1.msra.mxu0 0.0
    %1634 = vmatprep.subr.mxu0 0.0
    %1635 = vmatpush1.msra.mxu0 0.0
    %1636 = vmatprep.subr.mxu0 0.0
    %1637 = vmatpush1.msra.mxu0 0.0
    %1638 = vmatprep.subr.mxu0 0.0
    %1639 = vmatpush1.msra.mxu0 0.0
    %1640 = vmatprep.subr.mxu0 0.0
    %1641 = vmatpush1.msra.mxu0 0.0
    %1642 = vmatprep.subr.mxu0 0.0
    %1643 = vmatpush1.msra.mxu0 0.0
    %1644 = vmatprep.subr.mxu0 0.0
    %1645 = vmatpush1.msra.mxu0 0.0
    %1646 = vmatprep.subr.mxu0 0.0
    %1647 = vmatpush1.msra.mxu0 0.0
    %1648 = vmatprep.subr.mxu0 0.0
    %1649 = vmatpush1.msra.mxu0 0.0
    %1650 = vmatprep.subr.mxu0 0.0
    %1651 = vmatpush1.msra.mxu0 0.0
    %1652 = vmatprep.subr.mxu0 0.0
    %1653 = vmatpush1.msra.mxu0 0.0
    %1654 = vmatprep.subr.mxu0 0.0
    %1655 = vmatpush1.msra.mxu0 0.0
    %1656 = vmatprep.subr.mxu0 0.0
    %1657 = vmatpush1.msra.mxu0 0.0
    %1658 = vmatprep.subr.mxu0 0.0
    %1659 = vmatpush1.msra.mxu0 0.0
    %1660 = vmatprep.subr.mxu0 0.0
    %1661 = vmatpush1.msra.mxu0 0.0
    %1662 = vmatprep.subr.mxu0 0.0
    %1663 = vmatpush1.msra.mxu0 0.0
    %1664 = vmatprep.subr.mxu0 0.0
    %1665 = vmatpush1.msra.mxu0 0.0
    %1666 = vmatprep.subr.mxu0 0.0
    %1667 = vmatpush1.msra.mxu0 0.0
    %1668 = vmatprep.subr.mxu0 0.0
    %1669 = vmatpush1.msra.mxu0 0.0
    %1670 = vmatprep.mubr.f32.mxu0 0.0
    %1671 = vmatmul.mubr.f32.gmra.mrb[0].mxu0 %v1604
    %v1672 = vpop.f32.mrb[0].mxu0
    %v1673 = vadd.f32 0.0, %v1672
    %v1674 = vpop.f32.mrb[0].mxu0
    %1675 = vdwg.mxu0
    %1676 = vrot.lane.b32.xlu0 %v124, 40
    %v1677 = vpop.permute.xlu0 %1676
    %v1680 = vsel %vm165, %v1599, 0
    %1682 = vmatprep.subr.mxu0 0.0
    %1683 = vmatpush1.msra.mxu0 %v1677
    %1684 = vmatprep.subr.mxu0 0.0
    %1685 = vmatpush1.msra.mxu0 0.0
    %1686 = vmatprep.subr.mxu0 0.0
    %1687 = vmatpush1.msra.mxu0 0.0
    %1688 = vmatprep.subr.mxu0 0.0
    %1689 = vmatpush1.msra.mxu0 0.0
    %1690 = vmatprep.subr.mxu0 0.0
    %1691 = vmatpush1.msra.mxu0 0.0
    %1692 = vmatprep.subr.mxu0 0.0
    %1693 = vmatpush1.msra.mxu0 0.0
    %1694 = vmatprep.subr.mxu0 0.0
    %1695 = vmatpush1.msra.mxu0 0.0
    %1696 = vmatprep.subr.mxu0 0.0
    %1697 = vmatpush1.msra.mxu0 0.0
    %1698 = vmatprep.subr.mxu0 0.0
    %1699 = vmatpush1.msra.mxu0 0.0
    %1700 = vmatprep.subr.mxu0 0.0
    %1701 = vmatpush1.msra.mxu0 0.0
    %1702 = vmatprep.subr.mxu0 0.0
    %1703 = vmatpush1.msra.mxu0 0.0
    %1704 = vmatprep.subr.mxu0 0.0
    %1705 = vmatpush1.msra.mxu0 0.0
    %1706 = vmatprep.subr.mxu0 0.0
    %1707 = vmatpush1.msra.mxu0 0.0
    %1708 = vmatprep.subr.mxu0 0.0
    %1709 = vmatpush1.msra.mxu0 0.0
    %1710 = vmatprep.subr.mxu0 0.0
    %1711 = vmatpush1.msra.mxu0 0.0
    %1712 = vmatprep.subr.mxu0 0.0
    %1713 = vmatpush1.msra.mxu0 0.0
    %1714 = vmatprep.subr.mxu0 0.0
    %1715 = vmatpush1.msra.mxu0 0.0
    %1716 = vmatprep.subr.mxu0 0.0
    %1717 = vmatpush1.msra.mxu0 0.0
    %1718 = vmatprep.subr.mxu0 0.0
    %1719 = vmatpush1.msra.mxu0 0.0
    %1720 = vmatprep.subr.mxu0 0.0
    %1721 = vmatpush1.msra.mxu0 0.0
    %1722 = vmatprep.subr.mxu0 0.0
    %1723 = vmatpush1.msra.mxu0 0.0
    %1724 = vmatprep.subr.mxu0 0.0
    %1725 = vmatpush1.msra.mxu0 0.0
    %1726 = vmatprep.subr.mxu0 0.0
    %1727 = vmatpush1.msra.mxu0 0.0
    %1728 = vmatprep.subr.mxu0 0.0
    %1729 = vmatpush1.msra.mxu0 0.0
    %1730 = vmatprep.subr.mxu0 0.0
    %1731 = vmatpush1.msra.mxu0 0.0
    %1732 = vmatprep.subr.mxu0 0.0
    %1733 = vmatpush1.msra.mxu0 0.0
    %1734 = vmatprep.subr.mxu0 0.0
    %1735 = vmatpush1.msra.mxu0 0.0
    %1736 = vmatprep.subr.mxu0 0.0
    %1737 = vmatpush1.msra.mxu0 0.0
    %1738 = vmatprep.subr.mxu0 0.0
    %1739 = vmatpush1.msra.mxu0 0.0
    %1740 = vmatprep.subr.mxu0 0.0
    %1741 = vmatpush1.msra.mxu0 0.0
    %1742 = vmatprep.subr.mxu0 0.0
    %1743 = vmatpush1.msra.mxu0 0.0
    %1744 = vmatprep.subr.mxu0 0.0
    %1745 = vmatpush1.msra.mxu0 0.0
    %1746 = vmatprep.mubr.f32.mxu0 0.0
    %1747 = vmatmul.mubr.f32.gmra.mrb[0].mxu0 %v1680
    %v1748 = vpop.f32.mrb[0].mxu0
    %v1749 = vadd.f32 0.0, %v1748
    %v1750 = vpop.f32.mrb[0].mxu0
    %1751 = vdwg.mxu0
    %v1753 = vsel %vm165, %v1673, 0
    %v1756 = vsel %vm165, %v1749, 0
    %1758 = vmatprep.subr.mxu0 0.0
    %1759 = vmatpush1.msra.mxu0 %v161
    %1760 = vmatprep.subr.mxu0 0.0
    %1761 = vmatpush1.msra.mxu0 0.0
    %1762 = vmatprep.subr.mxu0 0.0
    %1763 = vmatpush1.msra.mxu0 0.0
    %1764 = vmatprep.subr.mxu0 0.0
    %1765 = vmatpush1.msra.mxu0 0.0
    %1766 = vmatprep.subr.mxu0 0.0
    %1767 = vmatpush1.msra.mxu0 0.0
    %1768 = vmatprep.subr.mxu0 0.0
    %1769 = vmatpush1.msra.mxu0 0.0
    %1770 = vmatprep.subr.mxu0 0.0
    %1771 = vmatpush1.msra.mxu0 0.0
    %1772 = vmatprep.subr.mxu0 0.0
    %1773 = vmatpush1.msra.mxu0 0.0
    %1774 = vmatprep.subr.mxu0 0.0
    %1775 = vmatpush1.msra.mxu0 0.0
    %1776 = vmatprep.subr.mxu0 0.0
    %1777 = vmatpush1.msra.mxu0 0.0
    %1778 = vmatprep.subr.mxu0 0.0
    %1779 = vmatpush1.msra.mxu0 0.0
    %1780 = vmatprep.subr.mxu0 0.0
    %1781 = vmatpush1.msra.mxu0 0.0
    %1782 = vmatprep.subr.mxu0 0.0
    %1783 = vmatpush1.msra.mxu0 0.0
    %1784 = vmatprep.subr.mxu0 0.0
    %1785 = vmatpush1.msra.mxu0 0.0
    %1786 = vmatprep.subr.mxu0 0.0
    %1787 = vmatpush1.msra.mxu0 0.0
    %1788 = vmatprep.subr.mxu0 0.0
    %1789 = vmatpush1.msra.mxu0 0.0
    %1790 = vmatprep.subr.mxu0 0.0
    %1791 = vmatpush1.msra.mxu0 0.0
    %1792 = vmatprep.subr.mxu0 0.0
    %1793 = vmatpush1.msra.mxu0 0.0
    %1794 = vmatprep.subr.mxu0 0.0
    %1795 = vmatpush1.msra.mxu0 0.0
    %1796 = vmatprep.subr.mxu0 0.0
    %1797 = vmatpush1.msra.mxu0 0.0
    %1798 = vmatprep.subr.mxu0 0.0
    %1799 = vmatpush1.msra.mxu0 0.0
    %1800 = vmatprep.subr.mxu0 0.0
    %1801 = vmatpush1.msra.mxu0 0.0
    %1802 = vmatprep.subr.mxu0 0.0
    %1803 = vmatpush1.msra.mxu0 0.0
    %1804 = vmatprep.subr.mxu0 0.0
    %1805 = vmatpush1.msra.mxu0 0.0
    %1806 = vmatprep.subr.mxu0 0.0
    %1807 = vmatpush1.msra.mxu0 0.0
    %1808 = vmatprep.subr.mxu0 0.0
    %1809 = vmatpush1.msra.mxu0 0.0
    %1810 = vmatprep.subr.mxu0 0.0
    %1811 = vmatpush1.msra.mxu0 0.0
    %1812 = vmatprep.subr.mxu0 0.0
    %1813 = vmatpush1.msra.mxu0 0.0
    %1814 = vmatprep.subr.mxu0 0.0
    %1815 = vmatpush1.msra.mxu0 0.0
    %1816 = vmatprep.subr.mxu0 0.0
    %1817 = vmatpush1.msra.mxu0 0.0
    %1818 = vmatprep.subr.mxu0 0.0
    %1819 = vmatpush1.msra.mxu0 0.0
    %1820 = vmatprep.subr.mxu0 0.0
    %1821 = vmatpush1.msra.mxu0 0.0
    %1822 = vmatprep.mubr.f32.mxu0 0.0
    %1823 = vmatmul.mubr.f32.gmra.mrb[0].mxu0 %v1753
    %v1824 = vpop.f32.mrb[0].mxu0
    %v1825 = vadd.f32 0.0, %v1824
    %v1826 = vpop.f32.mrb[0].mxu0
    %1827 = vmatprep.mubr.f32.mxu0 0.0
    %1828 = vmatmul.mubr.f32.gmra.mrb[0].mxu0 %v1756
    %v1829 = vpop.f32.mrb[0].mxu0
    %v1830 = vadd.f32 0.0, %v1829
    %v1831 = vpop.f32.mrb[0].mxu0
    %1832 = vdwg.mxu0
    %v1833 = vadd.f32 %v1416, %v1825
    %v1834 = vadd.f32 %v1417, %v1830
    %v1835 = vlaneseq
    %v1836 = vshrl.u32 %v1835, 7
    %v1837 = vsub.s32 0, %v1836
    %v1838 = vrot.slane %v30, %v1837
    %v1839 = vadd.f32 %v1833, %v1838
    %v1840 = vadd.f32 %v1834, %v1838
    %v1841 = vadd.f32 %v27, %v1839
    %v1842 = vadd.f32 %v28, %v1840
    %v1843 = vsel %vm45, %v1841, 0.0
    %1844 = vadd.xlane.f32.xlu0 %v1843
    %v1845 = vpop.xlane.xlu0 %1844
    %v1846 = vsel %vm45, %v1842, 0.0
    %1847 = vadd.xlane.f32.xlu0 %v1846
    %v1848 = vpop.xlane.xlu0 %1847
    %v1849 = vrcp.pop 32.0
    %v1850 = vmul.f32 %v1845, %v1849
    %v1851 = vmul.f32 %v1848, %v1849
    %v1852 = vsub.f32 %v1841, %v1850
    %v1853 = vsub.f32 %v1842, %v1851
    %v1854 = vmul.f32 %v1852, %v1852
    %v1855 = vmul.f32 %v1853, %v1853
    %v1856 = vsel %vm45, %v1854, 0.0
    %1857 = vadd.xlane.f32.xlu0 %v1856
    %v1858 = vpop.xlane.xlu0 %1857
    %v1859 = vsel %vm45, %v1855, 0.0
    %1860 = vadd.xlane.f32.xlu0 %v1859
    %v1861 = vpop.xlane.xlu0 %1860
    %v1862 = vmul.f32 %v1858, %v1849
    %v1863 = vmul.f32 %v1861, %v1849
    %v1864 = vadd.f32 %v1862, 1e-05
    %v1865 = vadd.f32 %v1863, 1e-05
    %v1866 = vrsqrt.pop %v1864
    %v1867 = vrsqrt.pop %v1865
    %v1868 = vmul.f32 %v1852, %v1866
    %v1869 = vmul.f32 %v1853, %v1867
    %v1870 = vlaneseq
    %v1871 = vshrl.u32 %v1870, 7
    %v1872 = vsub.s32 0, %v1871
    %v1873 = vrot.slane %v31, %v1872
    %v1874 = vmul.f32 %v1868, %v1873
    %v1875 = vmul.f32 %v1869, %v1873
    %v1876 = vlaneseq
    %v1877 = vshrl.u32 %v1876, 7
    %v1878 = vsub.s32 0, %v1877
    %v1879 = vrot.slane %v32, %v1878
    %v1880 = vadd.f32 %v1874, %v1879
    %v1881 = vadd.f32 %v1875, %v1879
    %v1882 = vld [vmem:[%s4] sm:$0xff]
    %v1883 = vld [vmem:[%s4 + $0x8] sm:$0xff]
    %v1884 = vld [vmem:[%s4 + $0x10] sm:$0xff]
    %v1885 = vld [vmem:[%s4 + $0x18] sm:$0xff]
    %v1886 = vlaneseq
    %v1887 = vshrl.u32 %v1886, 7
    %v1888 = vsub.s32 0, %v1887
    %v1889 = vrot.slane %v33, %v1888
    %v1891 = vsel %vm45, %v1880, 0
    %v1894 = vsel %vm45, %v1881, 0
    %1896 = vmatprep.subr.mxu0 0.0
    %1897 = vmatpush1.msra.mxu0 %v1882
    %1898 = vmatprep.subr.mxu0 0.0
    %1899 = vmatpush1.msra.mxu0 %v1883
    %1900 = vmatprep.subr.mxu0 0.0
    %1901 = vmatpush1.msra.mxu0 %v1884
    %1902 = vmatprep.subr.mxu0 0.0
    %1903 = vmatpush1.msra.mxu0 %v1885
    %1904 = vmatprep.subr.mxu0 0.0
    %1905 = vmatpush1.msra.mxu0 0.0
    %1906 = vmatprep.subr.mxu0 0.0
    %1907 = vmatpush1.msra.mxu0 0.0
    %1908 = vmatprep.subr.mxu0 0.0
    %1909 = vmatpush1.msra.mxu0 0.0
    %1910 = vmatprep.subr.mxu0 0.0
    %1911 = vmatpush1.msra.mxu0 0.0
    %1912 = vmatprep.subr.mxu0 0.0
    %1913 = vmatpush1.msra.mxu0 0.0
    %1914 = vmatprep.subr.mxu0 0.0
    %1915 = vmatpush1.msra.mxu0 0.0
    %1916 = vmatprep.subr.mxu0 0.0
    %1917 = vmatpush1.msra.mxu0 0.0
    %1918 = vmatprep.subr.mxu0 0.0
    %1919 = vmatpush1.msra.mxu0 0.0
    %1920 = vmatprep.subr.mxu0 0.0
    %1921 = vmatpush1.msra.mxu0 0.0
    %1922 = vmatprep.subr.mxu0 0.0
    %1923 = vmatpush1.msra.mxu0 0.0
    %1924 = vmatprep.subr.mxu0 0.0
    %1925 = vmatpush1.msra.mxu0 0.0
    %1926 = vmatprep.subr.mxu0 0.0
    %1927 = vmatpush1.msra.mxu0 0.0
    %1928 = vmatprep.subr.mxu0 0.0
    %1929 = vmatpush1.msra.mxu0 0.0
    %1930 = vmatprep.subr.mxu0 0.0
    %1931 = vmatpush1.msra.mxu0 0.0
    %1932 = vmatprep.subr.mxu0 0.0
    %1933 = vmatpush1.msra.mxu0 0.0
    %1934 = vmatprep.subr.mxu0 0.0
    %1935 = vmatpush1.msra.mxu0 0.0
    %1936 = vmatprep.subr.mxu0 0.0
    %1937 = vmatpush1.msra.mxu0 0.0
    %1938 = vmatprep.subr.mxu0 0.0
    %1939 = vmatpush1.msra.mxu0 0.0
    %1940 = vmatprep.subr.mxu0 0.0
    %1941 = vmatpush1.msra.mxu0 0.0
    %1942 = vmatprep.subr.mxu0 0.0
    %1943 = vmatpush1.msra.mxu0 0.0
    %1944 = vmatprep.subr.mxu0 0.0
    %1945 = vmatpush1.msra.mxu0 0.0
    %1946 = vmatprep.subr.mxu0 0.0
    %1947 = vmatpush1.msra.mxu0 0.0
    %1948 = vmatprep.subr.mxu0 0.0
    %1949 = vmatpush1.msra.mxu0 0.0
    %1950 = vmatprep.subr.mxu0 0.0
    %1951 = vmatpush1.msra.mxu0 0.0
    %1952 = vmatprep.subr.mxu0 0.0
    %1953 = vmatpush1.msra.mxu0 0.0
    %1954 = vmatprep.subr.mxu0 0.0
    %1955 = vmatpush1.msra.mxu0 0.0
    %1956 = vmatprep.subr.mxu0 0.0
    %1957 = vmatpush1.msra.mxu0 0.0
    %1958 = vmatprep.subr.mxu0 0.0
    %1959 = vmatpush1.msra.mxu0 0.0
    %1960 = vmatprep.mubr.f32.mxu0 0.0
    %1961 = vmatmul.mubr.f32.gmra.mrb[0].mxu0 %v1891
    %v1962 = vpop.f32.mrb[0].mxu0
    %v1963 = vadd.f32 %v1889, %v1962
    %v1964 = vpop.f32.mrb[0].mxu0
    %1965 = vmatprep.mubr.f32.mxu0 0.0
    %1966 = vmatmul.mubr.f32.gmra.mrb[0].mxu0 %v1894
    %v1967 = vpop.f32.mrb[0].mxu0
    %v1968 = vadd.f32 %v1889, %v1967
    %v1969 = vpop.f32.mrb[0].mxu0
    %1970 = vdwg.mxu0
    %v1971 = vmax.f32 %v1963, 0.0
    %v1972 = vmax.f32 %v1968, 0.0
    %v1973 = vld [vmem:[%s5] sm:$0xff]
    %v1974 = vld [vmem:[%s5 + $0x8] sm:$0xff]
    %v1975 = vld [vmem:[%s5 + $0x10] sm:$0xff]
    %v1976 = vld [vmem:[%s5 + $0x18] sm:$0xff]
    %v1977 = vld [vmem:[%s5 + $0x20] sm:$0xff]
    %v1978 = vld [vmem:[%s5 + $0x28] sm:$0xff]
    %v1979 = vld [vmem:[%s5 + $0x30] sm:$0xff]
    %v1980 = vld [vmem:[%s5 + $0x38] sm:$0xff]
    %v1981 = vlaneseq
    %v1982 = vshrl.u32 %v1981, 7
    %v1983 = vsub.s32 0, %v1982
    %v1984 = vrot.slane %v34, %v1983
    %vm1985 = vcmask 523264
    %v1987 = vsel %vm1985, %v1971, 0
    %v1990 = vsel %vm1985, %v1972, 0
    %1992 = vmatprep.subr.mxu0 0.0
    %1993 = vmatpush1.msra.mxu0 %v1973
    %1994 = vmatprep.subr.mxu0 0.0
    %1995 = vmatpush1.msra.mxu0 %v1974
    %1996 = vmatprep.subr.mxu0 0.0
    %1997 = vmatpush1.msra.mxu0 %v1975
    %1998 = vmatprep.subr.mxu0 0.0
    %1999 = vmatpush1.msra.mxu0 %v1976
    %2000 = vmatprep.subr.mxu0 0.0
    %2001 = vmatpush1.msra.mxu0 %v1977
    %2002 = vmatprep.subr.mxu0 0.0
    %2003 = vmatpush1.msra.mxu0 %v1978
    %2004 = vmatprep.subr.mxu0 0.0
    %2005 = vmatpush1.msra.mxu0 %v1979
    %2006 = vmatprep.subr.mxu0 0.0
    %2007 = vmatpush1.msra.mxu0 %v1980
    %2008 = vmatprep.subr.mxu0 0.0
    %2009 = vmatpush1.msra.mxu0 0.0
    %2010 = vmatprep.subr.mxu0 0.0
    %2011 = vmatpush1.msra.mxu0 0.0
    %2012 = vmatprep.subr.mxu0 0.0
    %2013 = vmatpush1.msra.mxu0 0.0
    %2014 = vmatprep.subr.mxu0 0.0
    %2015 = vmatpush1.msra.mxu0 0.0
    %2016 = vmatprep.subr.mxu0 0.0
    %2017 = vmatpush1.msra.mxu0 0.0
    %2018 = vmatprep.subr.mxu0 0.0
    %2019 = vmatpush1.msra.mxu0 0.0
    %2020 = vmatprep.subr.mxu0 0.0
    %2021 = vmatpush1.msra.mxu0 0.0
    %2022 = vmatprep.subr.mxu0 0.0
    %2023 = vmatpush1.msra.mxu0 0.0
    %2024 = vmatprep.subr.mxu0 0.0
    %2025 = vmatpush1.msra.mxu0 0.0
    %2026 = vmatprep.subr.mxu0 0.0
    %2027 = vmatpush1.msra.mxu0 0.0
    %2028 = vmatprep.subr.mxu0 0.0
    %2029 = vmatpush1.msra.mxu0 0.0
    %2030 = vmatprep.subr.mxu0 0.0
    %2031 = vmatpush1.msra.mxu0 0.0
    %2032 = vmatprep.subr.mxu0 0.0
    %2033 = vmatpush1.msra.mxu0 0.0
    %2034 = vmatprep.subr.mxu0 0.0
    %2035 = vmatpush1.msra.mxu0 0.0
    %2036 = vmatprep.subr.mxu0 0.0
    %2037 = vmatpush1.msra.mxu0 0.0
    %2038 = vmatprep.subr.mxu0 0.0
    %2039 = vmatpush1.msra.mxu0 0.0
    %2040 = vmatprep.subr.mxu0 0.0
    %2041 = vmatpush1.msra.mxu0 0.0
    %2042 = vmatprep.subr.mxu0 0.0
    %2043 = vmatpush1.msra.mxu0 0.0
    %2044 = vmatprep.subr.mxu0 0.0
    %2045 = vmatpush1.msra.mxu0 0.0
    %2046 = vmatprep.subr.mxu0 0.0
    %2047 = vmatpush1.msra.mxu0 0.0
    %2048 = vmatprep.subr.mxu0 0.0
    %2049 = vmatpush1.msra.mxu0 0.0
    %2050 = vmatprep.subr.mxu0 0.0
    %2051 = vmatpush1.msra.mxu0 0.0
    %2052 = vmatprep.subr.mxu0 0.0
    %2053 = vmatpush1.msra.mxu0 0.0
    %2054 = vmatprep.subr.mxu0 0.0
    %2055 = vmatpush1.msra.mxu0 0.0
    %2056 = vmatprep.mubr.f32.mxu0 0.0
    %2057 = vmatmul.mubr.f32.gmra.mrb[0].mxu0 %v1987
    %v2058 = vpop.f32.mrb[0].mxu0
    %v2059 = vadd.f32 %v1984, %v2058
    %v2060 = vpop.f32.mrb[0].mxu0
    %2061 = vmatprep.mubr.f32.mxu0 0.0
    %2062 = vmatmul.mubr.f32.gmra.mrb[0].mxu0 %v1990
    %v2063 = vpop.f32.mrb[0].mxu0
    %v2064 = vadd.f32 %v1984, %v2063
    %v2065 = vpop.f32.mrb[0].mxu0
    %2066 = vdwg.mxu0
    %v2067 = vadd.f32 %v1880, %v2059
    %v2068 = vadd.f32 %v1881, %v2064
    %v2069 = vsel %vm45, %v2067, 0.0
    %2070 = vadd.xlane.f32.xlu0 %v2069
    %v2071 = vpop.xlane.xlu0 %2070
    %v2072 = vsel %vm45, %v2068, 0.0
    %2073 = vadd.xlane.f32.xlu0 %v2072
    %v2074 = vpop.xlane.xlu0 %2073
    %v2075 = vmul.f32 %v2071, %v1849
    %v2076 = vmul.f32 %v2074, %v1849
    %v2077 = vsub.f32 %v2067, %v2075
    %v2078 = vsub.f32 %v2068, %v2076
    %v2079 = vmul.f32 %v2077, %v2077
    %v2080 = vmul.f32 %v2078, %v2078
    %v2081 = vsel %vm45, %v2079, 0.0
    %2082 = vadd.xlane.f32.xlu0 %v2081
    %v2083 = vpop.xlane.xlu0 %2082
    %v2084 = vsel %vm45, %v2080, 0.0
    %2085 = vadd.xlane.f32.xlu0 %v2084
    %v2086 = vpop.xlane.xlu0 %2085
    %v2087 = vmul.f32 %v2083, %v1849
    %v2088 = vmul.f32 %v2086, %v1849
    %v2089 = vadd.f32 %v2087, 1e-05
    %v2090 = vadd.f32 %v2088, 1e-05
    %v2091 = vrsqrt.pop %v2089
    %v2092 = vrsqrt.pop %v2090
    %v2093 = vmul.f32 %v2077, %v2091
    %v2094 = vmul.f32 %v2078, %v2092
    %v2095 = vlaneseq
    %v2096 = vshrl.u32 %v2095, 7
    %v2097 = vsub.s32 0, %v2096
    %v2098 = vrot.slane %v35, %v2097
    %v2099 = vmul.f32 %v2093, %v2098
    %v2100 = vmul.f32 %v2094, %v2098
    %v2101 = vlaneseq
    %v2102 = vshrl.u32 %v2101, 7
    %v2103 = vsub.s32 0, %v2102
    %v2104 = vrot.slane %v36, %v2103
    %v2105 = vadd.f32 %v2099, %v2104
    %v2106 = vadd.f32 %v2100, %v2104
    %2107 = vst.msk [vmem:[#allocation2] sm:$0xff] %vm45, %v2105
    %2108 = vst.msk [vmem:[#allocation2 + $0x8] sm:$0xff] %vm45, %v2106
    // Predicated region
    $region30: #{tf_encoder_forward.1} parent=1 // pred_check
      _
    $region31: #{tf_encoder_forward.1} parent=1 // pred_check_branch
      %2110 = sbr.rel (0) target = $region33
    $region32: #{tf_encoder_forward.1} parent=1 // pred_region
      %s2112 = ssub.s32 256, 256
      %2113 = vsyncadd [#allocation3], %s2112
      %s2114 = sshll.u32 [#allocation2], 4
      %s2115 = int_to_ptr.vmem [resolvable:$true] %s2114
      %2120 = dma.vmem_to_hbm [thread:$0]  %s2115, 256, %s7, [#allocation3], 128, 128, 8
    $region33: #{tf_encoder_forward.1} parent=1 // pred_fallthru
      _
    // Predicated region
    $region34: #{tf_encoder_forward.1} parent=1 // pred_check
      _
    $region35: #{tf_encoder_forward.1} parent=1 // pred_check_branch
      %2122 = sbr.rel (0) target = $region37
    $region36: #{tf_encoder_forward.1} parent=1 // pred_region
      %2123 = dma.done [#allocation3], 256
    $region37: #{tf_encoder_forward.1} parent=1 // pred_fallthru
      _
    %2124 = vsyncpa [#allocation3], 1

</llo_original>
